<compile_context>
chip_gen: v5e
topology: v5e:2x2
jax: 0.10.0
libtpu: 0.0.40
codegen_flags: <defaults>
</compile_context>

<pallas_src>
import functools

import jax
import jax.numpy as jnp
from jax.experimental import pallas as pl
from jax.experimental.pallas import tpu as pltpu


# -----------------------------------------------------------------------------
# Fused forward kernel
# -----------------------------------------------------------------------------
def fused_gat_kernel(x_ref, adjb_ref, p_ref, w_ref, asrc_ref, shift_ref,
                     wfc_ref, bfc_ref, out_ref, xcat_ref, *, num_layers, d_pad):
    adj_bias = adjb_ref[...]                       # (N, N): 0 on edges, -1e30 off
    h = x_ref[...]                                 # (N, D_PAD) padded features
    xcat_ref[:, 0:d_pad] = h                       # JK slot 0 = raw features

    for layer in range(num_layers):                # static unroll (4 layers)
        # Projection (BN folded into W); column d_pad is the folded a_dst, so
        # alpha_dst comes out of the same matmul for free.
        h_ext = jnp.dot(h, w_ref[layer], preferred_element_type=jnp.float32)
        hp = h_ext[:, 0:d_pad]                     # (N, D_PAD)
        alpha_dst = h_ext[:, d_pad:d_pad + 1]      # (N, 1)
        # alpha_src as a row via an NT matmul (no transpose op): (1, N)
        alpha_src = jax.lax.dot_general(
            asrc_ref[layer], hp, (((1,), (1,)), ((), ())),
            preferred_element_type=jnp.float32)

        # e[i, j] = LeakyReLU_0.2(alpha_dst[i] + alpha_src[j]) + additive mask
        e = alpha_dst + alpha_src
        e = jnp.maximum(e, 0.2 * e) + adj_bias     # slope in (0,1) => max form

        # Row-wise softmax over incoming edges; masked entries underflow to 0
        # (self-loops guarantee every real row has a finite max).
        m = jnp.max(e, axis=-1, keepdims=True)
        p = jnp.exp(e - m)
        att = p * pl.reciprocal(jnp.sum(p, axis=-1, keepdims=True), approx=True)

        # Aggregate, add folded (conv bias + BN) shift, ReLU.
        agg = jnp.dot(att, hp, preferred_element_type=jnp.float32)
        h = jnp.maximum(agg + shift_ref[layer], 0.0)
        xcat_ref[:, (layer + 1) * d_pad:(layer + 2) * d_pad] = h

    # Jumping-knowledge readout: global_add_pool + 5 Linear heads collapsed
    # into a single matmul pair with a pre-summed bias.
    pooled = jnp.dot(p_ref[...], xcat_ref[...],
                     preferred_element_type=jnp.float32)          # (G, 5*D_PAD)
    logits = jnp.dot(pooled, wfc_ref[...],
                     preferred_element_type=jnp.float32) + bfc_ref[...]

    # log_softmax
    mx = jnp.max(logits, axis=-1, keepdims=True)
    s = logits - mx
    out_ref[...] = s - jnp.log(jnp.sum(jnp.exp(s), axis=-1, keepdims=True))


# -----------------------------------------------------------------------------
# Single pallas_call wrapper (whole model in one kernel)
# -----------------------------------------------------------------------------
def gat_forward(x_pad, adj_bias, p_onehot, fused):
    n, d_pad = x_pad.shape
    g = p_onehot.shape[0]
    num_layers = fused["w"].shape[0]
    c = fused["wfc"].shape[1]
    kernel = functools.partial(fused_gat_kernel,
                               num_layers=num_layers, d_pad=d_pad)
    return pl.pallas_call(
        kernel,
        out_shape=jax.ShapeDtypeStruct((g, c), jnp.float32),
        in_specs=[pl.BlockSpec(memory_space=pltpu.MemorySpace.VMEM)] * 8,
        out_specs=pl.BlockSpec(memory_space=pltpu.MemorySpace.VMEM),
        scratch_shapes=[pltpu.VMEM((n, (num_layers + 1) * d_pad), jnp.float32)],
    )(x_pad, adj_bias, p_onehot, fused["w"], fused["a_src"],
      fused["shift"], fused["wfc"], fused["bfc"])


# -----------------------------------------------------------------------------
# Parameter construction (mirrors the PyTorch module) and fusion / folding
# -----------------------------------------------------------------------------
def glorot(key, shape):
    fan_in, fan_out = shape
    limit = (6.0 / (fan_in + fan_out)) ** 0.5
    return jax.random.uniform(key, shape, jnp.float32, -limit, limit)


def make_gat_params(key, num_features, num_hidden, num_classes, num_layers=4):
    conv_params, bn_params, fc_params = [], [], []
    in_dims = [num_features] + [num_hidden] * (num_layers - 1)
    for i in range(num_layers):
        key, kw, ks, kd = jax.random.split(key, 4)
        conv_params.append(dict(
            w=glorot(kw, (in_dims[i], num_hidden)),
            a_src=glorot(ks, (1, num_hidden)),
            a_dst=glorot(kd, (1, num_hidden)),
            bias=jnp.zeros((1, num_hidden), jnp.float32),
        ))
        bn_params.append(dict(gamma=jnp.ones((1, num_hidden), jnp.float32),
                              beta=jnp.zeros((1, num_hidden), jnp.float32),
                              mean=jnp.zeros((1, num_hidden), jnp.float32),
                              var=jnp.ones((1, num_hidden), jnp.float32)))
    fc_in = [num_features] + [num_hidden] * num_layers
    for i in range(num_layers + 1):
        key, kw, kb = jax.random.split(key, 3)
        fc_params.append(dict(
            w_t=glorot(kw, (fc_in[i], num_classes)),        # stored as W^T
            b=0.01 * jax.random.normal(kb, (1, num_classes), jnp.float32),
        ))
    return conv_params, bn_params, fc_params


def fuse_params(conv_params, bn_params, fc_params, d_pad, eps=1e-5):
    """Fold BN(eval)+bias into W / a / shift, fold a_dst into the projection,
    zero-pad hidden dims to d_pad, stack per-layer tensors, and collapse the
    jumping-knowledge Linear heads into one matrix + summed bias."""
    w_stack, asrc_stack, shift_stack = [], [], []
    for cp, bp in zip(conv_params, bn_params):
        fin, d = cp["w"].shape
        scale = bp["gamma"] / jnp.sqrt(bp["var"] + eps)     # (1, d); gamma != 0
        w = cp["w"] * scale                                  # BN scale into W
        a_src = cp["a_src"] / scale                          # keep alphas exact
        a_dst = cp["a_dst"] / scale
        shift = (cp["bias"] - bp["mean"]) * scale + bp["beta"]
        # zero-pad to the lane-friendly width (exact: padded cols stay 0)
        w = jnp.pad(w, ((0, d_pad - fin), (0, d_pad - d)))
        a_src = jnp.pad(a_src, ((0, 0), (0, d_pad - d)))
        a_dst = jnp.pad(a_dst, ((0, 0), (0, d_pad - d)))
        shift = jnp.pad(shift, ((0, 0), (0, d_pad - d)))
        # fold a_dst as one extra projection column
        w_stack.append(jnp.concatenate([w, w @ a_dst.T], axis=1))
        asrc_stack.append(a_src)
        shift_stack.append(shift)
    wfc_blocks, bfc = [], None
    for fp in fc_params:
        fin = fp["w_t"].shape[0]
        wfc_blocks.append(jnp.pad(fp["w_t"], ((0, d_pad - fin), (0, 0))))
        bfc = fp["b"] if bfc is None else bfc + fp["b"]
    return dict(
        w=jnp.stack(w_stack),                    # (L, d_pad, d_pad + 1)
        a_src=jnp.stack(asrc_stack),             # (L, 1, d_pad)
        shift=jnp.stack(shift_stack),            # (L, 1, d_pad)
        wfc=jnp.concatenate(wfc_blocks, axis=0), # ((L+1)*d_pad, C)
        bfc=bfc,                                 # (1, C)
    )


def prepare_inputs(x, adj, batch, n_graphs, d_pad):
    """Pad features to d_pad lanes, nodes to a multiple of 8 sublanes; build
    the additive adjacency bias and the pooling one-hot.  Padded nodes are
    fully masked (bias -1e30 everywhere, zero pooling weight)."""
    n, f = x.shape
    n_pad = ((n + 7) // 8) * 8
    x_pad = jnp.pad(x, ((0, n_pad - n), (0, d_pad - f)))
    adj_bias = jnp.where(adj > 0.5, 0.0, -1e30).astype(jnp.float32)
    adj_bias = jnp.pad(adj_bias, ((0, n_pad - n), (0, n_pad - n)),
                       constant_values=-1e30)
    p_onehot = (batch[None, :] == jnp.arange(n_graphs)[:, None]).astype(jnp.float32)
    p_onehot = jnp.pad(p_onehot, ((0, 0), (0, n_pad - n)))
    return x_pad, adj_bias, p_onehot


# -----------------------------------------------------------------------------
if __name__ == "__main__":
    num_features, num_hidden, num_classes = 16, 32, 8
    n_nodes, n_graphs = 24, 2
    d_pad = 128                     # lane-friendly padded hidden width
    assert d_pad % 128 == 0 and d_pad >= max(num_features, num_hidden)

    key = jax.random.PRNGKey(0)
    key, kx, kadj = jax.random.split(key, 3)

    # node features
    x = jax.random.normal(kx, (n_nodes, num_features), jnp.float32)

    # batch assignment: two graphs of 12 nodes each
    batch = jnp.repeat(jnp.arange(n_graphs), n_nodes // n_graphs)

    # dense adjacency (within-graph edges) + self loops; adj[i, j] = edge j -> i
    same_graph = batch[:, None] == batch[None, :]
    rnd = jax.random.uniform(kadj, (n_nodes, n_nodes))
    adj = jnp.where(same_graph & (rnd < 0.35), 1.0, 0.0).astype(jnp.float32)
    adj = jnp.maximum(adj, jnp.eye(n_nodes, dtype=jnp.float32))

    conv_params, bn_params, fc_params = make_gat_params(
        key, num_features, num_hidden, num_classes)
    fused = fuse_params(conv_params, bn_params, fc_params, d_pad)
    x_pad, adj_bias, p_onehot = prepare_inputs(x, adj, batch, n_graphs, d_pad)

    fwd = jax.jit(gat_forward)
    logp = fwd(x_pad, adj_bias, p_onehot, fused)
    jax.block_until_ready(logp)

    assert logp.shape == (n_graphs, num_classes)
    assert bool(jnp.all(jnp.isfinite(logp)))
    assert bool(jnp.allclose(jnp.exp(logp).sum(-1), 1.0, atol=1e-3))
    print("KERNEL_OK")
</pallas_src>

<mosaic_0001>
module attributes {stable_mosaic.version = 11 : i64} {
  func.func @fused_gat_kernel(%arg0: memref<24x128xf32, #tpu.memory_space<vmem>>, %arg1: memref<24x24xf32, #tpu.memory_space<vmem>>, %arg2: memref<2x24xf32, #tpu.memory_space<vmem>>, %arg3: memref<4x128x129xf32, #tpu.memory_space<vmem>>, %arg4: memref<4x1x128xf32, #tpu.memory_space<vmem>>, %arg5: memref<4x1x128xf32, #tpu.memory_space<vmem>>, %arg6: memref<640x8xf32, #tpu.memory_space<vmem>>, %arg7: memref<1x8xf32, #tpu.memory_space<vmem>>, %arg8: memref<2x8xf32, #tpu.memory_space<vmem>>, %arg9: memref<24x640xf32, #tpu.memory_space<vmem>>) attributes {dimension_semantics = [], scalar_prefetch = 0 : i64, scratch_operands = 1 : i64, tpu.core_type = #tpu.core_type<tc>} {
    %c0 = arith.constant 0 : index
    %c0_0 = arith.constant 0 : index
    %0 = vector.load %arg1[%c0, %c0_0] : memref<24x24xf32, #tpu.memory_space<vmem>>, vector<24x24xf32>
    %c0_1 = arith.constant 0 : index
    %c0_2 = arith.constant 0 : index
    %1 = vector.load %arg0[%c0_1, %c0_2] : memref<24x128xf32, #tpu.memory_space<vmem>>, vector<24x128xf32>
    %c0_3 = arith.constant 0 : index
    %c0_4 = arith.constant 0 : index
    %2 = vector.load %arg9[%c0_3, %c0_4] : memref<24x640xf32, #tpu.memory_space<vmem>>, vector<24x128xf32>
    tpu.vector_store %arg9[%c0_3, %c0_4], %1 {strides = array<i32>} : memref<24x640xf32, #tpu.memory_space<vmem>>, vector<24x128xf32>,
    %c0_5 = arith.constant 0 : index
    %c0_6 = arith.constant 0 : index
    %c0_7 = arith.constant 0 : index
    %3 = vector.load %arg3[%c0_5, %c0_6, %c0_7] : memref<4x128x129xf32, #tpu.memory_space<vmem>>, vector<1x128x129xf32>
    %4 = vector.shape_cast %3 : vector<1x128x129xf32> to vector<128x129xf32>
    %cst = arith.constant dense<0.000000e+00> : vector<24x129xf32>
    %5 = tpu.matmul %1, %4, %cst {dimension_numbers = #tpu.dot_dimension_numbers<[1], [0], [0], [1], [0, 0, 1, 1], [], []>} : vector<24x128xf32>, vector<128x129xf32>, vector<24x129xf32> -> vector<24x129xf32>
    %6 = vector.extract_strided_slice %5 {offsets = [0, 0], sizes = [24, 128], strides = [1, 1]} : vector<24x129xf32> to vector<24x128xf32>
    %7 = vector.extract_strided_slice %5 {offsets = [0, 128], sizes = [24, 1], strides = [1, 1]} : vector<24x129xf32> to vector<24x1xf32>
    %c0_8 = arith.constant 0 : index
    %c0_9 = arith.constant 0 : index
    %c0_10 = arith.constant 0 : index
    %8 = vector.load %arg4[%c0_8, %c0_9, %c0_10] : memref<4x1x128xf32, #tpu.memory_space<vmem>>, vector<1x1x128xf32>
    %9 = vector.shape_cast %8 : vector<1x1x128xf32> to vector<1x128xf32>
    %cst_11 = arith.constant dense<0.000000e+00> : vector<1x24xf32>
    %10 = tpu.matmul %9, %6, %cst_11 {dimension_numbers = #tpu.dot_dimension_numbers<[1], [1], [0], [0], [0, 0, 1, 0], [], []>} : vector<1x128xf32>, vector<24x128xf32>, vector<1x24xf32> -> vector<1x24xf32>
    %11 = vector.broadcast %7 : vector<24x1xf32> to vector<24x24xf32>
    %12 = vector.broadcast %10 : vector<1x24xf32> to vector<24x24xf32>
    %13 = arith.addf %11, %12 : vector<24x24xf32>
    %cst_12 = arith.constant 2.000000e-01 : f32
    %14 = vector.broadcast %cst_12 : f32 to vector<24x24xf32>
    %15 = arith.mulf %14, %13 : vector<24x24xf32>
    %16 = arith.maximumf %13, %15 : vector<24x24xf32>
    %17 = arith.addf %16, %0 : vector<24x24xf32>
    %cst_13 = arith.constant dense<0xFF800000> : vector<24xf32>
    %18 = vector.multi_reduction <maximumf>, %17, %cst_13 [1] : vector<24x24xf32> to vector<24xf32>
    %19 = vector.shape_cast %18 : vector<24xf32> to vector<24x1xf32>
    %20 = vector.broadcast %19 : vector<24x1xf32> to vector<24x24xf32>
    %21 = arith.subf %17, %20 : vector<24x24xf32>
    %22 = math.exp %21 : vector<24x24xf32>
    %cst_14 = arith.constant dense<0.000000e+00> : vector<24xf32>
    %23 = vector.multi_reduction <add>, %22, %cst_14 [1] : vector<24x24xf32> to vector<24xf32>
    %24 = vector.shape_cast %23 : vector<24xf32> to vector<24x1xf32>
    %25 = tpu.reciprocal %24 {approx = true} : vector<24x1xf32> -> vector<24x1xf32>
    %26 = vector.broadcast %25 : vector<24x1xf32> to vector<24x24xf32>
    %27 = arith.mulf %22, %26 : vector<24x24xf32>
    %cst_15 = arith.constant dense<0.000000e+00> : vector<24x128xf32>
    %28 = tpu.matmul %27, %6, %cst_15 {dimension_numbers = #tpu.dot_dimension_numbers<[1], [0], [0], [1], [0, 0, 1, 1], [], []>} : vector<24x24xf32>, vector<24x128xf32>, vector<24x128xf32> -> vector<24x128xf32>
    %c0_16 = arith.constant 0 : index
    %c0_17 = arith.constant 0 : index
    %c0_18 = arith.constant 0 : index
    %29 = vector.load %arg5[%c0_16, %c0_17, %c0_18] : memref<4x1x128xf32, #tpu.memory_space<vmem>>, vector<1x1x128xf32>
    %30 = vector.shape_cast %29 : vector<1x1x128xf32> to vector<1x128xf32>
    %31 = vector.broadcast %30 : vector<1x128xf32> to vector<24x128xf32>
    %32 = arith.addf %28, %31 : vector<24x128xf32>
    %cst_19 = arith.constant 0.000000e+00 : f32
    %33 = vector.broadcast %cst_19 : f32 to vector<24x128xf32>
    %34 = arith.maximumf %32, %33 : vector<24x128xf32>
    %c0_20 = arith.constant 0 : index
    %c128 = arith.constant 128 : index
    %35 = vector.load %arg9[%c0_20, %c128] : memref<24x640xf32, #tpu.memory_space<vmem>>, vector<24x128xf32>
    tpu.vector_store %arg9[%c0_20, %c128], %34 {strides = array<i32>} : memref<24x640xf32, #tpu.memory_space<vmem>>, vector<24x128xf32>,
    %c1 = arith.constant 1 : index
    %c0_21 = arith.constant 0 : index
    %c0_22 = arith.constant 0 : index
    %36 = vector.load %arg3[%c1, %c0_21, %c0_22] : memref<4x128x129xf32, #tpu.memory_space<vmem>>, vector<1x128x129xf32>
    %37 = vector.shape_cast %36 : vector<1x128x129xf32> to vector<128x129xf32>
    %cst_23 = arith.constant dense<0.000000e+00> : vector<24x129xf32>
    %38 = tpu.matmul %34, %37, %cst_23 {dimension_numbers = #tpu.dot_dimension_numbers<[1], [0], [0], [1], [0, 0, 1, 1], [], []>} : vector<24x128xf32>, vector<128x129xf32>, vector<24x129xf32> -> vector<24x129xf32>
    %39 = vector.extract_strided_slice %38 {offsets = [0, 0], sizes = [24, 128], strides = [1, 1]} : vector<24x129xf32> to vector<24x128xf32>
    %40 = vector.extract_strided_slice %38 {offsets = [0, 128], sizes = [24, 1], strides = [1, 1]} : vector<24x129xf32> to vector<24x1xf32>
    %c1_24 = arith.constant 1 : index
    %c0_25 = arith.constant 0 : index
    %c0_26 = arith.constant 0 : index
    %41 = vector.load %arg4[%c1_24, %c0_25, %c0_26] : memref<4x1x128xf32, #tpu.memory_space<vmem>>, vector<1x1x128xf32>
    %42 = vector.shape_cast %41 : vector<1x1x128xf32> to vector<1x128xf32>
    %cst_27 = arith.constant dense<0.000000e+00> : vector<1x24xf32>
    %43 = tpu.matmul %42, %39, %cst_27 {dimension_numbers = #tpu.dot_dimension_numbers<[1], [1], [0], [0], [0, 0, 1, 0], [], []>} : vector<1x128xf32>, vector<24x128xf32>, vector<1x24xf32> -> vector<1x24xf32>
    %44 = vector.broadcast %40 : vector<24x1xf32> to vector<24x24xf32>
    %45 = vector.broadcast %43 : vector<1x24xf32> to vector<24x24xf32>
    %46 = arith.addf %44, %45 : vector<24x24xf32>
    %cst_28 = arith.constant 2.000000e-01 : f32
    %47 = vector.broadcast %cst_28 : f32 to vector<24x24xf32>
    %48 = arith.mulf %47, %46 : vector<24x24xf32>
    %49 = arith.maximumf %46, %48 : vector<24x24xf32>
    %50 = arith.addf %49, %0 : vector<24x24xf32>
    %cst_29 = arith.constant dense<0xFF800000> : vector<24xf32>
    %51 = vector.multi_reduction <maximumf>, %50, %cst_29 [1] : vector<24x24xf32> to vector<24xf32>
    %52 = vector.shape_cast %51 : vector<24xf32> to vector<24x1xf32>
    %53 = vector.broadcast %52 : vector<24x1xf32> to vector<24x24xf32>
    %54 = arith.subf %50, %53 : vector<24x24xf32>
    %55 = math.exp %54 : vector<24x24xf32>
    %cst_30 = arith.constant dense<0.000000e+00> : vector<24xf32>
    %56 = vector.multi_reduction <add>, %55, %cst_30 [1] : vector<24x24xf32> to vector<24xf32>
    %57 = vector.shape_cast %56 : vector<24xf32> to vector<24x1xf32>
    %58 = tpu.reciprocal %57 {approx = true} : vector<24x1xf32> -> vector<24x1xf32>
    %59 = vector.broadcast %58 : vector<24x1xf32> to vector<24x24xf32>
    %60 = arith.mulf %55, %59 : vector<24x24xf32>
    %cst_31 = arith.constant dense<0.000000e+00> : vector<24x128xf32>
    %61 = tpu.matmul %60, %39, %cst_31 {dimension_numbers = #tpu.dot_dimension_numbers<[1], [0], [0], [1], [0, 0, 1, 1], [], []>} : vector<24x24xf32>, vector<24x128xf32>, vector<24x128xf32> -> vector<24x128xf32>
    %c1_32 = arith.constant 1 : index
    %c0_33 = arith.constant 0 : index
    %c0_34 = arith.constant 0 : index
    %62 = vector.load %arg5[%c1_32, %c0_33, %c0_34] : memref<4x1x128xf32, #tpu.memory_space<vmem>>, vector<1x1x128xf32>
    %63 = vector.shape_cast %62 : vector<1x1x128xf32> to vector<1x128xf32>
    %64 = vector.broadcast %63 : vector<1x128xf32> to vector<24x128xf32>
    %65 = arith.addf %61, %64 : vector<24x128xf32>
    %cst_35 = arith.constant 0.000000e+00 : f32
    %66 = vector.broadcast %cst_35 : f32 to vector<24x128xf32>
    %67 = arith.maximumf %65, %66 : vector<24x128xf32>
    %c0_36 = arith.constant 0 : index
    %c256 = arith.constant 256 : index
    %68 = vector.load %arg9[%c0_36, %c256] : memref<24x640xf32, #tpu.memory_space<vmem>>, vector<24x128xf32>
    tpu.vector_store %arg9[%c0_36, %c256], %67 {strides = array<i32>} : memref<24x640xf32, #tpu.memory_space<vmem>>, vector<24x128xf32>,
    %c2 = arith.constant 2 : index
    %c0_37 = arith.constant 0 : index
    %c0_38 = arith.constant 0 : index
    %69 = vector.load %arg3[%c2, %c0_37, %c0_38] : memref<4x128x129xf32, #tpu.memory_space<vmem>>, vector<1x128x129xf32>
    %70 = vector.shape_cast %69 : vector<1x128x129xf32> to vector<128x129xf32>
    %cst_39 = arith.constant dense<0.000000e+00> : vector<24x129xf32>
    %71 = tpu.matmul %67, %70, %cst_39 {dimension_numbers = #tpu.dot_dimension_numbers<[1], [0], [0], [1], [0, 0, 1, 1], [], []>} : vector<24x128xf32>, vector<128x129xf32>, vector<24x129xf32> -> vector<24x129xf32>
    %72 = vector.extract_strided_slice %71 {offsets = [0, 0], sizes = [24, 128], strides = [1, 1]} : vector<24x129xf32> to vector<24x128xf32>
    %73 = vector.extract_strided_slice %71 {offsets = [0, 128], sizes = [24, 1], strides = [1, 1]} : vector<24x129xf32> to vector<24x1xf32>
    %c2_40 = arith.constant 2 : index
    %c0_41 = arith.constant 0 : index
    %c0_42 = arith.constant 0 : index
    %74 = vector.load %arg4[%c2_40, %c0_41, %c0_42] : memref<4x1x128xf32, #tpu.memory_space<vmem>>, vector<1x1x128xf32>
    %75 = vector.shape_cast %74 : vector<1x1x128xf32> to vector<1x128xf32>
    %cst_43 = arith.constant dense<0.000000e+00> : vector<1x24xf32>
    %76 = tpu.matmul %75, %72, %cst_43 {dimension_numbers = #tpu.dot_dimension_numbers<[1], [1], [0], [0], [0, 0, 1, 0], [], []>} : vector<1x128xf32>, vector<24x128xf32>, vector<1x24xf32> -> vector<1x24xf32>
    %77 = vector.broadcast %73 : vector<24x1xf32> to vector<24x24xf32>
    %78 = vector.broadcast %76 : vector<1x24xf32> to vector<24x24xf32>
    %79 = arith.addf %77, %78 : vector<24x24xf32>
    %cst_44 = arith.constant 2.000000e-01 : f32
    %80 = vector.broadcast %cst_44 : f32 to vector<24x24xf32>
    %81 = arith.mulf %80, %79 : vector<24x24xf32>
    %82 = arith.maximumf %79, %81 : vector<24x24xf32>
    %83 = arith.addf %82, %0 : vector<24x24xf32>
    %cst_45 = arith.constant dense<0xFF800000> : vector<24xf32>
    %84 = vector.multi_reduction <maximumf>, %83, %cst_45 [1] : vector<24x24xf32> to vector<24xf32>
    %85 = vector.shape_cast %84 : vector<24xf32> to vector<24x1xf32>
    %86 = vector.broadcast %85 : vector<24x1xf32> to vector<24x24xf32>
    %87 = arith.subf %83, %86 : vector<24x24xf32>
    %88 = math.exp %87 : vector<24x24xf32>
    %cst_46 = arith.constant dense<0.000000e+00> : vector<24xf32>
    %89 = vector.multi_reduction <add>, %88, %cst_46 [1] : vector<24x24xf32> to vector<24xf32>
    %90 = vector.shape_cast %89 : vector<24xf32> to vector<24x1xf32>
    %91 = tpu.reciprocal %90 {approx = true} : vector<24x1xf32> -> vector<24x1xf32>
    %92 = vector.broadcast %91 : vector<24x1xf32> to vector<24x24xf32>
    %93 = arith.mulf %88, %92 : vector<24x24xf32>
    %cst_47 = arith.constant dense<0.000000e+00> : vector<24x128xf32>
    %94 = tpu.matmul %93, %72, %cst_47 {dimension_numbers = #tpu.dot_dimension_numbers<[1], [0], [0], [1], [0, 0, 1, 1], [], []>} : vector<24x24xf32>, vector<24x128xf32>, vector<24x128xf32> -> vector<24x128xf32>
    %c2_48 = arith.constant 2 : index
    %c0_49 = arith.constant 0 : index
    %c0_50 = arith.constant 0 : index
    %95 = vector.load %arg5[%c2_48, %c0_49, %c0_50] : memref<4x1x128xf32, #tpu.memory_space<vmem>>, vector<1x1x128xf32>
    %96 = vector.shape_cast %95 : vector<1x1x128xf32> to vector<1x128xf32>
    %97 = vector.broadcast %96 : vector<1x128xf32> to vector<24x128xf32>
    %98 = arith.addf %94, %97 : vector<24x128xf32>
    %cst_51 = arith.constant 0.000000e+00 : f32
    %99 = vector.broadcast %cst_51 : f32 to vector<24x128xf32>
    %100 = arith.maximumf %98, %99 : vector<24x128xf32>
    %c0_52 = arith.constant 0 : index
    %c384 = arith.constant 384 : index
    %101 = vector.load %arg9[%c0_52, %c384] : memref<24x640xf32, #tpu.memory_space<vmem>>, vector<24x128xf32>
    tpu.vector_store %arg9[%c0_52, %c384], %100 {strides = array<i32>} : memref<24x640xf32, #tpu.memory_space<vmem>>, vector<24x128xf32>,
    %c3 = arith.constant 3 : index
    %c0_53 = arith.constant 0 : index
    %c0_54 = arith.constant 0 : index
    %102 = vector.load %arg3[%c3, %c0_53, %c0_54] : memref<4x128x129xf32, #tpu.memory_space<vmem>>, vector<1x128x129xf32>
    %103 = vector.shape_cast %102 : vector<1x128x129xf32> to vector<128x129xf32>
    %cst_55 = arith.constant dense<0.000000e+00> : vector<24x129xf32>
    %104 = tpu.matmul %100, %103, %cst_55 {dimension_numbers = #tpu.dot_dimension_numbers<[1], [0], [0], [1], [0, 0, 1, 1], [], []>} : vector<24x128xf32>, vector<128x129xf32>, vector<24x129xf32> -> vector<24x129xf32>
    %105 = vector.extract_strided_slice %104 {offsets = [0, 0], sizes = [24, 128], strides = [1, 1]} : vector<24x129xf32> to vector<24x128xf32>
    %106 = vector.extract_strided_slice %104 {offsets = [0, 128], sizes = [24, 1], strides = [1, 1]} : vector<24x129xf32> to vector<24x1xf32>
    %c3_56 = arith.constant 3 : index
    %c0_57 = arith.constant 0 : index
    %c0_58 = arith.constant 0 : index
    %107 = vector.load %arg4[%c3_56, %c0_57, %c0_58] : memref<4x1x128xf32, #tpu.memory_space<vmem>>, vector<1x1x128xf32>
    %108 = vector.shape_cast %107 : vector<1x1x128xf32> to vector<1x128xf32>
    %cst_59 = arith.constant dense<0.000000e+00> : vector<1x24xf32>
    %109 = tpu.matmul %108, %105, %cst_59 {dimension_numbers = #tpu.dot_dimension_numbers<[1], [1], [0], [0], [0, 0, 1, 0], [], []>} : vector<1x128xf32>, vector<24x128xf32>, vector<1x24xf32> -> vector<1x24xf32>
    %110 = vector.broadcast %106 : vector<24x1xf32> to vector<24x24xf32>
    %111 = vector.broadcast %109 : vector<1x24xf32> to vector<24x24xf32>
    %112 = arith.addf %110, %111 : vector<24x24xf32>
    %cst_60 = arith.constant 2.000000e-01 : f32
    %113 = vector.broadcast %cst_60 : f32 to vector<24x24xf32>
    %114 = arith.mulf %113, %112 : vector<24x24xf32>
    %115 = arith.maximumf %112, %114 : vector<24x24xf32>
    %116 = arith.addf %115, %0 : vector<24x24xf32>
    %cst_61 = arith.constant dense<0xFF800000> : vector<24xf32>
    %117 = vector.multi_reduction <maximumf>, %116, %cst_61 [1] : vector<24x24xf32> to vector<24xf32>
    %118 = vector.shape_cast %117 : vector<24xf32> to vector<24x1xf32>
    %119 = vector.broadcast %118 : vector<24x1xf32> to vector<24x24xf32>
    %120 = arith.subf %116, %119 : vector<24x24xf32>
    %121 = math.exp %120 : vector<24x24xf32>
    %cst_62 = arith.constant dense<0.000000e+00> : vector<24xf32>
    %122 = vector.multi_reduction <add>, %121, %cst_62 [1] : vector<24x24xf32> to vector<24xf32>
    %123 = vector.shape_cast %122 : vector<24xf32> to vector<24x1xf32>
    %124 = tpu.reciprocal %123 {approx = true} : vector<24x1xf32> -> vector<24x1xf32>
    %125 = vector.broadcast %124 : vector<24x1xf32> to vector<24x24xf32>
    %126 = arith.mulf %121, %125 : vector<24x24xf32>
    %cst_63 = arith.constant dense<0.000000e+00> : vector<24x128xf32>
    %127 = tpu.matmul %126, %105, %cst_63 {dimension_numbers = #tpu.dot_dimension_numbers<[1], [0], [0], [1], [0, 0, 1, 1], [], []>} : vector<24x24xf32>, vector<24x128xf32>, vector<24x128xf32> -> vector<24x128xf32>
    %c3_64 = arith.constant 3 : index
    %c0_65 = arith.constant 0 : index
    %c0_66 = arith.constant 0 : index
    %128 = vector.load %arg5[%c3_64, %c0_65, %c0_66] : memref<4x1x128xf32, #tpu.memory_space<vmem>>, vector<1x1x128xf32>
    %129 = vector.shape_cast %128 : vector<1x1x128xf32> to vector<1x128xf32>
    %130 = vector.broadcast %129 : vector<1x128xf32> to vector<24x128xf32>
    %131 = arith.addf %127, %130 : vector<24x128xf32>
    %cst_67 = arith.constant 0.000000e+00 : f32
    %132 = vector.broadcast %cst_67 : f32 to vector<24x128xf32>
    %133 = arith.maximumf %131, %132 : vector<24x128xf32>
    %c0_68 = arith.constant 0 : index
    %c512 = arith.constant 512 : index
    %134 = vector.load %arg9[%c0_68, %c512] : memref<24x640xf32, #tpu.memory_space<vmem>>, vector<24x128xf32>
    tpu.vector_store %arg9[%c0_68, %c512], %133 {strides = array<i32>} : memref<24x640xf32, #tpu.memory_space<vmem>>, vector<24x128xf32>,
    %c0_69 = arith.constant 0 : index
    %c0_70 = arith.constant 0 : index
    %135 = vector.load %arg2[%c0_69, %c0_70] : memref<2x24xf32, #tpu.memory_space<vmem>>, vector<2x24xf32>
    %c0_71 = arith.constant 0 : index
    %c0_72 = arith.constant 0 : index
    %136 = vector.load %arg9[%c0_71, %c0_72] : memref<24x640xf32, #tpu.memory_space<vmem>>, vector<24x640xf32>
    %cst_73 = arith.constant dense<0.000000e+00> : vector<2x640xf32>
    %137 = tpu.matmul %135, %136, %cst_73 {dimension_numbers = #tpu.dot_dimension_numbers<[1], [0], [0], [1], [0, 0, 1, 1], [], []>} : vector<2x24xf32>, vector<24x640xf32>, vector<2x640xf32> -> vector<2x640xf32>
    %c0_74 = arith.constant 0 : index
    %c0_75 = arith.constant 0 : index
    %138 = vector.load %arg6[%c0_74, %c0_75] : memref<640x8xf32, #tpu.memory_space<vmem>>, vector<640x8xf32>
    %cst_76 = arith.constant dense<0.000000e+00> : vector<2x8xf32>
    %139 = tpu.matmul %137, %138, %cst_76 {dimension_numbers = #tpu.dot_dimension_numbers<[1], [0], [0], [1], [0, 0, 1, 1], [], []>} : vector<2x640xf32>, vector<640x8xf32>, vector<2x8xf32> -> vector<2x8xf32>
    %c0_77 = arith.constant 0 : index
    %c0_78 = arith.constant 0 : index
    %140 = vector.load %arg7[%c0_77, %c0_78] : memref<1x8xf32, #tpu.memory_space<vmem>>, vector<1x8xf32>
    %141 = vector.broadcast %140 : vector<1x8xf32> to vector<2x8xf32>
    %142 = arith.addf %139, %141 : vector<2x8xf32>
    %cst_79 = arith.constant dense<0xFF800000> : vector<2xf32>
    %143 = vector.multi_reduction <maximumf>, %142, %cst_79 [1] : vector<2x8xf32> to vector<2xf32>
    %144 = vector.shape_cast %143 : vector<2xf32> to vector<2x1xf32>
    %145 = vector.broadcast %144 : vector<2x1xf32> to vector<2x8xf32>
    %146 = arith.subf %142, %145 : vector<2x8xf32>
    %147 = math.exp %146 : vector<2x8xf32>
    %cst_80 = arith.constant dense<0.000000e+00> : vector<2xf32>
    %148 = vector.multi_reduction <add>, %147, %cst_80 [1] : vector<2x8xf32> to vector<2xf32>
    %149 = vector.shape_cast %148 : vector<2xf32> to vector<2x1xf32>
    %150 = math.log %149 : vector<2x1xf32>
    %151 = vector.broadcast %150 : vector<2x1xf32> to vector<2x8xf32>
    %152 = arith.subf %146, %151 : vector<2x8xf32>
    %c0_81 = arith.constant 0 : index
    %c0_82 = arith.constant 0 : index
    %153 = vector.load %arg8[%c0_81, %c0_82] : memref<2x8xf32, #tpu.memory_space<vmem>>, vector<2x8xf32>
    tpu.vector_store %arg8[%c0_81, %c0_82], %152 {strides = array<i32>} : memref<2x8xf32, #tpu.memory_space<vmem>>, vector<2x8xf32>,
    return
  }
}

</mosaic_0001>

<llo_original>
// kernel: gat_forward.1
$region0: #{gat_forward.1}
  #allocation0 [shape = 'u32[]', space=smem, size = 0x4, offset = 0x4, fixed_abs, tag = 'smem constant byte address 0x4 - core index']
  #allocation1 [shape = 'u32[72,128]{1,0:T(1,128)}', space=vmem, size = 0x9000, scoped, tag = 'internal scratch']
  #allocation2 [shape = 'f32[24,640]{1,0:T(8,128)}', space=vmem, size = 0xf000, scoped, tag = 'scratch operand']
  %s0 = inlined_call_operand.vmem [shape: f32[24,128], index: 0, kind: input, shape index: {}]
  %s1 = inlined_call_operand.vmem [shape: f32[24,24], index: 1, kind: input, shape index: {}]
  %s2 = inlined_call_operand.vmem [shape: f32[2,24], index: 2, kind: input, shape index: {}]
  %s3 = inlined_call_operand.vmem [shape: f32[4,128,129], index: 3, kind: input, shape index: {}]
  %s4 = inlined_call_operand.vmem [shape: f32[4,1,128], index: 4, kind: input, shape index: {}]
  %s5 = inlined_call_operand.vmem [shape: f32[4,1,128], index: 5, kind: input, shape index: {}]
  %s6 = inlined_call_operand.vmem [shape: f32[640,8], index: 6, kind: input, shape index: {}]
  %s7 = inlined_call_operand.vmem [shape: f32[1,8], index: 7, kind: input, shape index: {}]
  %s8 = inlined_call_operand.hbm [shape: f32[2,8], index: 8, kind: output, shape index: {}]
  %s9 = sld [smem:[#allocation0]]
  $region42: #{gat_forward.1} parent=0
    _
  %s11 = ssub.s32 1, %s9
  %s12 = scalar_select 0, %s11, %s9
  $region1: #{gat_forward.1} parent=0
    #allocation3 [shape = 'u8[1024]{0}', space=vmem, size = 0x400, scoped, tag = 'output window, operand 0, single buffered']
    #allocation4 [shape = 's32[1]{0}', space=sflag, size = 0x4, scoped, tag = 'scoped memory for gat_forward.1']
    %13 = vsyncpa [#allocation4], 0
    // Predicated region
    $region2: #{gat_forward.1} parent=1 // pred_check
      _
    $region3: #{gat_forward.1} parent=1 // pred_check_branch
      %15 = sbr.rel (0) target = $region5
    $region4: #{gat_forward.1} parent=1 // pred_region
      _
    $region5: #{gat_forward.1} parent=1 // pred_fallthru
      _
    // Predicated region
    $region6: #{gat_forward.1} parent=1 // pred_check
      _
    $region7: #{gat_forward.1} parent=1 // pred_check_branch
      %17 = sbr.rel (0) target = $region9
    $region8: #{gat_forward.1} parent=1 // pred_region
      _
    $region9: #{gat_forward.1} parent=1 // pred_fallthru
      _
    // Predicated region
    $region10: #{gat_forward.1} parent=1 // pred_check
      _
    $region11: #{gat_forward.1} parent=1 // pred_check_branch
      %19 = sbr.rel (0) target = $region13
    $region12: #{gat_forward.1} parent=1 // pred_region
      _
    $region13: #{gat_forward.1} parent=1 // pred_fallthru
      _
    // Predicated region
    $region14: #{gat_forward.1} parent=1 // pred_check
      _
    $region15: #{gat_forward.1} parent=1 // pred_check_branch
      %21 = sbr.rel (0) target = $region17
    $region16: #{gat_forward.1} parent=1 // pred_region
      _
    $region17: #{gat_forward.1} parent=1 // pred_fallthru
      _
    // Predicated region
    $region18: #{gat_forward.1} parent=1 // pred_check
      _
    $region19: #{gat_forward.1} parent=1 // pred_check_branch
      %23 = sbr.rel (0) target = $region21
    $region20: #{gat_forward.1} parent=1 // pred_region
      _
    $region21: #{gat_forward.1} parent=1 // pred_fallthru
      _
    // Predicated region
    $region22: #{gat_forward.1} parent=1 // pred_check
      _
    $region23: #{gat_forward.1} parent=1 // pred_check_branch
      %25 = sbr.rel (0) target = $region25
    $region24: #{gat_forward.1} parent=1 // pred_region
      _
    $region25: #{gat_forward.1} parent=1 // pred_fallthru
      _
    // Predicated region
    $region26: #{gat_forward.1} parent=1 // pred_check
      _
    $region27: #{gat_forward.1} parent=1 // pred_check_branch
      %27 = sbr.rel (0) target = $region29
    $region28: #{gat_forward.1} parent=1 // pred_region
      _
    $region29: #{gat_forward.1} parent=1 // pred_fallthru
      _
    // Predicated region
    $region30: #{gat_forward.1} parent=1 // pred_check
      _
    $region31: #{gat_forward.1} parent=1 // pred_check_branch
      %29 = sbr.rel (0) target = $region33
    $region32: #{gat_forward.1} parent=1 // pred_region
      _
    $region33: #{gat_forward.1} parent=1 // pred_fallthru
      _
    %v30 = vld [vmem:[%s1] sm:$0xff]
    %v31 = vld [vmem:[%s1 + $0x8] sm:$0xff]
    %v32 = vld [vmem:[%s1 + $0x10] sm:$0xff]
    %v33 = vld [vmem:[%s0] sm:$0xff]
    %v34 = vld [vmem:[%s0 + $0x8] sm:$0xff]
    %v35 = vld [vmem:[%s0 + $0x10] sm:$0xff]
    %36 = vst [vmem:[#allocation2] sm:$0xff] %v33
    %37 = vst [vmem:[#allocation2 + $0x28] sm:$0xff] %v34
    %38 = vst [vmem:[#allocation2 + $0x50] sm:$0xff] %v35
    %v39 = vld [vmem:[%s3] sm:$0xff]
    %v40 = vld [vmem:[%s3 + $0x8] sm:$0xff]
    %v41 = vld [vmem:[%s3 + $0x10] sm:$0xff]
    %v42 = vld [vmem:[%s3 + $0x18] sm:$0xff]
    %v43 = vld [vmem:[%s3 + $0x20] sm:$0xff]
    %v44 = vld [vmem:[%s3 + $0x28] sm:$0xff]
    %v45 = vld [vmem:[%s3 + $0x30] sm:$0xff]
    %v46 = vld [vmem:[%s3 + $0x38] sm:$0xff]
    %v47 = vld [vmem:[%s3 + $0x40] sm:$0xff]
    %v48 = vld [vmem:[%s3 + $0x48] sm:$0xff]
    %v49 = vld [vmem:[%s3 + $0x50] sm:$0xff]
    %v50 = vld [vmem:[%s3 + $0x58] sm:$0xff]
    %v51 = vld [vmem:[%s3 + $0x60] sm:$0xff]
    %v52 = vld [vmem:[%s3 + $0x68] sm:$0xff]
    %v53 = vld [vmem:[%s3 + $0x70] sm:$0xff]
    %v54 = vld [vmem:[%s3 + $0x78] sm:$0xff]
    %v55 = vld [vmem:[%s3 + $0x80] sm:$0xff]
    %v56 = vld [vmem:[%s3 + $0x88] sm:$0xff]
    %v57 = vld [vmem:[%s3 + $0x90] sm:$0xff]
    %v58 = vld [vmem:[%s3 + $0x98] sm:$0xff]
    %v59 = vld [vmem:[%s3 + $0xa0] sm:$0xff]
    %v60 = vld [vmem:[%s3 + $0xa8] sm:$0xff]
    %v61 = vld [vmem:[%s3 + $0xb0] sm:$0xff]
    %v62 = vld [vmem:[%s3 + $0xb8] sm:$0xff]
    %v63 = vld [vmem:[%s3 + $0xc0] sm:$0xff]
    %v64 = vld [vmem:[%s3 + $0xc8] sm:$0xff]
    %v65 = vld [vmem:[%s3 + $0xd0] sm:$0xff]
    %v66 = vld [vmem:[%s3 + $0xd8] sm:$0xff]
    %v67 = vld [vmem:[%s3 + $0xe0] sm:$0xff]
    %v68 = vld [vmem:[%s3 + $0xe8] sm:$0xff]
    %v69 = vld [vmem:[%s3 + $0xf0] sm:$0xff]
    %v70 = vld [vmem:[%s3 + $0xf8] sm:$0xff]
    %71 = vmatpush.msra.mxu0 %v69
    %72 = vmatpush.msra.mxu0 %v67
    %73 = vmatpush.msra.mxu0 %v65
    %74 = vmatpush.msra.mxu0 %v63
    %75 = vmatpush.msra.mxu0 %v61
    %76 = vmatpush.msra.mxu0 %v59
    %77 = vmatpush.msra.mxu0 %v57
    %78 = vmatpush.msra.mxu0 %v55
    %79 = vmatpush.msra.mxu0 %v53
    %80 = vmatpush.msra.mxu0 %v51
    %81 = vmatpush.msra.mxu0 %v49
    %82 = vmatpush.msra.mxu0 %v47
    %83 = vmatpush.msra.mxu0 %v45
    %84 = vmatpush.msra.mxu0 %v43
    %85 = vmatpush.msra.mxu0 %v41
    %86 = vmatpush.msra.mxu0 %v39
    %87 = vmatmul.f32.gmra.mxu0 %v33
    %v88 = vpop.f32.mrf.mxu0
    %v89 = vadd.f32 0.0, %v88
    %90 = vmatmul.f32.gmra.mxu0 %v34
    %v91 = vpop.f32.mrf.mxu0
    %v92 = vadd.f32 0.0, %v91
    %93 = vmatmul.f32.gmra.mxu0 %v35
    %v94 = vpop.f32.mrf.mxu0
    %v95 = vadd.f32 0.0, %v94
    %96 = vdwg.mxu0
    %97 = vmatpush.msra.mxu0 %v70
    %98 = vmatpush.msra.mxu0 %v68
    %99 = vmatpush.msra.mxu0 %v66
    %100 = vmatpush.msra.mxu0 %v64
    %101 = vmatpush.msra.mxu0 %v62
    %102 = vmatpush.msra.mxu0 %v60
    %103 = vmatpush.msra.mxu0 %v58
    %104 = vmatpush.msra.mxu0 %v56
    %105 = vmatpush.msra.mxu0 %v54
    %106 = vmatpush.msra.mxu0 %v52
    %107 = vmatpush.msra.mxu0 %v50
    %108 = vmatpush.msra.mxu0 %v48
    %109 = vmatpush.msra.mxu0 %v46
    %110 = vmatpush.msra.mxu0 %v44
    %111 = vmatpush.msra.mxu0 %v42
    %112 = vmatpush.msra.mxu0 %v40
    %113 = vmatmul.f32.gmra.mxu0 %v33
    %v114 = vpop.f32.mrf.mxu0
    %v115 = vadd.f32 0.0, %v114
    %116 = vmatmul.f32.gmra.mxu0 %v34
    %v117 = vpop.f32.mrf.mxu0
    %v118 = vadd.f32 0.0, %v117
    %119 = vmatmul.f32.gmra.mxu0 %v35
    %v120 = vpop.f32.mrf.mxu0
    %v121 = vadd.f32 0.0, %v120
    %122 = vdwg.mxu0
    %v123 = vld [vmem:[%s4] sm:$0x1]
    %124 = vmatpush.xpose.msra.mxu0 0.0
    %125 = vmatpush.xpose.msra.mxu0 0.0
    %126 = vmatpush.xpose.msra.mxu0 0.0
    %127 = vmatpush.xpose.msra.mxu0 0.0
    %128 = vmatpush.xpose.msra.mxu0 0.0
    %129 = vmatpush.xpose.msra.mxu0 0.0
    %130 = vmatpush.xpose.msra.mxu0 0.0
    %131 = vmatpush.xpose.msra.mxu0 0.0
    %132 = vmatpush.xpose.msra.mxu0 0.0
    %133 = vmatpush.xpose.msra.mxu0 0.0
    %134 = vmatpush.xpose.msra.mxu0 0.0
    %135 = vmatpush.xpose.msra.mxu0 0.0
    %136 = vmatpush.xpose.msra.mxu0 0.0
    %137 = vmatpush.xpose.msra.mxu0 %v95
    %138 = vmatpush.xpose.msra.mxu0 %v92
    %139 = vmatpush.xpose.msra.mxu0 %v89
    %140 = vmatmul.f32.gmra.mxu0 %v123
    %v141 = vpop.f32.mrf.mxu0
    %v142 = vadd.f32 0.0, %v141
    %143 = vdwg.mxu0
    %145 = vset.pattern.permute.xlu0 0
    %146 = vperm.xlu0 %145, %v115
    %v147 = vpop.permute.xlu0 %146
    %150 = vset.pattern.permute.xlu0 0
    %151 = vperm.xlu0 %150, %v118
    %v152 = vpop.permute.xlu0 %151
    %155 = vset.pattern.permute.xlu0 0
    %156 = vperm.xlu0 %155, %v121
    %v157 = vpop.permute.xlu0 %156
    %v159 = vperm.slane %v142, 0
    %v160 = vadd.f32 %v147, %v159
    %v161 = vadd.f32 %v152, %v159
    %v162 = vadd.f32 %v157, %v159
    %v163 = vmul.f32 %v160, 0.2
    %v164 = vmul.f32 %v161, 0.2
    %v165 = vmul.f32 %v162, 0.2
    %v166 = vmax.f32 %v160, %v163
    %v167 = vmax.f32 %v161, %v164
    %v168 = vmax.f32 %v162, %v165
    %v169 = vadd.f32 %v166, %v30
    %v170 = vadd.f32 %v167, %v31
    %v171 = vadd.f32 %v168, %v32
    %vm172 = vcmask 195584
    %v173 = vsel %vm172, %v169, -inf
    %174 = vmax.xlane.f32.xlu0 %v173
    %v175 = vpop.xlane.xlu0 %174
    %v176 = vsel %vm172, %v170, -inf
    %177 = vmax.xlane.f32.xlu0 %v176
    %v178 = vpop.xlane.xlu0 %177
    %v179 = vsel %vm172, %v171, -inf
    %180 = vmax.xlane.f32.xlu0 %v179
    %v181 = vpop.xlane.xlu0 %180
    %v182 = vsub.f32 %v169, %v175
    %v183 = vsub.f32 %v170, %v178
    %v184 = vsub.f32 %v171, %v181
    %v185 = vmul.f32 %v182, 1.442695
    %v186 = vpow.pop %v185
    %v187 = vmul.f32 %v183, 1.442695
    %v188 = vpow.pop %v187
    %v189 = vmul.f32 %v184, 1.442695
    %v190 = vpow.pop %v189
    %v191 = vsel %vm172, %v186, 0.0
    %192 = vadd.xlane.f32.xlu0 %v191
    %v193 = vpop.xlane.xlu0 %192
    %v194 = vsel %vm172, %v188, 0.0
    %195 = vadd.xlane.f32.xlu0 %v194
    %v196 = vpop.xlane.xlu0 %195
    %v197 = vsel %vm172, %v190, 0.0
    %198 = vadd.xlane.f32.xlu0 %v197
    %v199 = vpop.xlane.xlu0 %198
    %v200 = vrcp.pop %v193
    %v201 = vrcp.pop %v196
    %v202 = vrcp.pop %v199
    %v203 = vmul.f32 %v186, %v200
    %v204 = vmul.f32 %v188, %v201
    %v205 = vmul.f32 %v190, %v202
    %v206 = vld [vmem:[%s5] sm:$0x1]
    %v208 = vperm.slane %v206, 0
    %v211 = vsel %vm172, %v203, 0
    %v214 = vsel %vm172, %v204, 0
    %v217 = vsel %vm172, %v205, 0
    %219 = vmatpush.msra.mxu0 0.0
    %220 = vmatpush.msra.mxu0 0.0
    %221 = vmatpush.msra.mxu0 0.0
    %222 = vmatpush.msra.mxu0 0.0
    %223 = vmatpush.msra.mxu0 0.0
    %224 = vmatpush.msra.mxu0 0.0
    %225 = vmatpush.msra.mxu0 0.0
    %226 = vmatpush.msra.mxu0 0.0
    %227 = vmatpush.msra.mxu0 0.0
    %228 = vmatpush.msra.mxu0 0.0
    %229 = vmatpush.msra.mxu0 0.0
    %230 = vmatpush.msra.mxu0 0.0
    %231 = vmatpush.msra.mxu0 0.0
    %232 = vmatpush.msra.mxu0 %v95
    %233 = vmatpush.msra.mxu0 %v92
    %234 = vmatpush.msra.mxu0 %v89
    %235 = vmatmul.f32.gmra.mxu0 %v211
    %v236 = vpop.f32.mrf.mxu0
    %v237 = vadd.f32 %v208, %v236
    %238 = vmatmul.f32.gmra.mxu0 %v214
    %v239 = vpop.f32.mrf.mxu0
    %v240 = vadd.f32 %v208, %v239
    %241 = vmatmul.f32.gmra.mxu0 %v217
    %v242 = vpop.f32.mrf.mxu0
    %v243 = vadd.f32 %v208, %v242
    %244 = vdwg.mxu0
    %v245 = vmax.f32 %v237, 0.0
    %v246 = vmax.f32 %v240, 0.0
    %v247 = vmax.f32 %v243, 0.0
    %248 = vst [vmem:[#allocation2 + $0x8] sm:$0xff] %v245
    %249 = vst [vmem:[#allocation2 + $0x30] sm:$0xff] %v246
    %250 = vst [vmem:[#allocation2 + $0x58] sm:$0xff] %v247
    %s251 = scalar_lea.vmem %s3, 256
    %v252 = vld [vmem:[%s251] sm:$0xff]
    %v253 = vld [vmem:[%s251 + $0x8] sm:$0xff]
    %v254 = vld [vmem:[%s251 + $0x10] sm:$0xff]
    %v255 = vld [vmem:[%s251 + $0x18] sm:$0xff]
    %v256 = vld [vmem:[%s251 + $0x20] sm:$0xff]
    %v257 = vld [vmem:[%s251 + $0x28] sm:$0xff]
    %v258 = vld [vmem:[%s251 + $0x30] sm:$0xff]
    %v259 = vld [vmem:[%s251 + $0x38] sm:$0xff]
    %v260 = vld [vmem:[%s251 + $0x40] sm:$0xff]
    %v261 = vld [vmem:[%s251 + $0x48] sm:$0xff]
    %v262 = vld [vmem:[%s251 + $0x50] sm:$0xff]
    %v263 = vld [vmem:[%s251 + $0x58] sm:$0xff]
    %v264 = vld [vmem:[%s251 + $0x60] sm:$0xff]
    %v265 = vld [vmem:[%s251 + $0x68] sm:$0xff]
    %v266 = vld [vmem:[%s251 + $0x70] sm:$0xff]
    %v267 = vld [vmem:[%s251 + $0x78] sm:$0xff]
    %v268 = vld [vmem:[%s251 + $0x80] sm:$0xff]
    %v269 = vld [vmem:[%s251 + $0x88] sm:$0xff]
    %v270 = vld [vmem:[%s251 + $0x90] sm:$0xff]
    %v271 = vld [vmem:[%s251 + $0x98] sm:$0xff]
    %v272 = vld [vmem:[%s251 + $0xa0] sm:$0xff]
    %v273 = vld [vmem:[%s251 + $0xa8] sm:$0xff]
    %v274 = vld [vmem:[%s251 + $0xb0] sm:$0xff]
    %v275 = vld [vmem:[%s251 + $0xb8] sm:$0xff]
    %v276 = vld [vmem:[%s251 + $0xc0] sm:$0xff]
    %v277 = vld [vmem:[%s251 + $0xc8] sm:$0xff]
    %v278 = vld [vmem:[%s251 + $0xd0] sm:$0xff]
    %v279 = vld [vmem:[%s251 + $0xd8] sm:$0xff]
    %v280 = vld [vmem:[%s251 + $0xe0] sm:$0xff]
    %v281 = vld [vmem:[%s251 + $0xe8] sm:$0xff]
    %v282 = vld [vmem:[%s251 + $0xf0] sm:$0xff]
    %v283 = vld [vmem:[%s251 + $0xf8] sm:$0xff]
    %284 = vmatpush.msra.mxu0 %v282
    %285 = vmatpush.msra.mxu0 %v280
    %286 = vmatpush.msra.mxu0 %v278
    %287 = vmatpush.msra.mxu0 %v276
    %288 = vmatpush.msra.mxu0 %v274
    %289 = vmatpush.msra.mxu0 %v272
    %290 = vmatpush.msra.mxu0 %v270
    %291 = vmatpush.msra.mxu0 %v268
    %292 = vmatpush.msra.mxu0 %v266
    %293 = vmatpush.msra.mxu0 %v264
    %294 = vmatpush.msra.mxu0 %v262
    %295 = vmatpush.msra.mxu0 %v260
    %296 = vmatpush.msra.mxu0 %v258
    %297 = vmatpush.msra.mxu0 %v256
    %298 = vmatpush.msra.mxu0 %v254
    %299 = vmatpush.msra.mxu0 %v252
    %300 = vmatmul.f32.gmra.mxu0 %v245
    %v301 = vpop.f32.mrf.mxu0
    %v302 = vadd.f32 0.0, %v301
    %303 = vmatmul.f32.gmra.mxu0 %v246
    %v304 = vpop.f32.mrf.mxu0
    %v305 = vadd.f32 0.0, %v304
    %306 = vmatmul.f32.gmra.mxu0 %v247
    %v307 = vpop.f32.mrf.mxu0
    %v308 = vadd.f32 0.0, %v307
    %309 = vdwg.mxu0
    %310 = vmatpush.msra.mxu0 %v283
    %311 = vmatpush.msra.mxu0 %v281
    %312 = vmatpush.msra.mxu0 %v279
    %313 = vmatpush.msra.mxu0 %v277
    %314 = vmatpush.msra.mxu0 %v275
    %315 = vmatpush.msra.mxu0 %v273
    %316 = vmatpush.msra.mxu0 %v271
    %317 = vmatpush.msra.mxu0 %v269
    %318 = vmatpush.msra.mxu0 %v267
    %319 = vmatpush.msra.mxu0 %v265
    %320 = vmatpush.msra.mxu0 %v263
    %321 = vmatpush.msra.mxu0 %v261
    %322 = vmatpush.msra.mxu0 %v259
    %323 = vmatpush.msra.mxu0 %v257
    %324 = vmatpush.msra.mxu0 %v255
    %325 = vmatpush.msra.mxu0 %v253
    %326 = vmatmul.f32.gmra.mxu0 %v245
    %v327 = vpop.f32.mrf.mxu0
    %v328 = vadd.f32 0.0, %v327
    %329 = vmatmul.f32.gmra.mxu0 %v246
    %v330 = vpop.f32.mrf.mxu0
    %v331 = vadd.f32 0.0, %v330
    %332 = vmatmul.f32.gmra.mxu0 %v247
    %v333 = vpop.f32.mrf.mxu0
    %v334 = vadd.f32 0.0, %v333
    %335 = vdwg.mxu0
    %s336 = scalar_lea.vmem %s4, 1
    %v337 = vld [vmem:[%s336] sm:$0x1]
    %338 = vmatpush.xpose.msra.mxu0 0.0
    %339 = vmatpush.xpose.msra.mxu0 0.0
    %340 = vmatpush.xpose.msra.mxu0 0.0
    %341 = vmatpush.xpose.msra.mxu0 0.0
    %342 = vmatpush.xpose.msra.mxu0 0.0
    %343 = vmatpush.xpose.msra.mxu0 0.0
    %344 = vmatpush.xpose.msra.mxu0 0.0
    %345 = vmatpush.xpose.msra.mxu0 0.0
    %346 = vmatpush.xpose.msra.mxu0 0.0
    %347 = vmatpush.xpose.msra.mxu0 0.0
    %348 = vmatpush.xpose.msra.mxu0 0.0
    %349 = vmatpush.xpose.msra.mxu0 0.0
    %350 = vmatpush.xpose.msra.mxu0 0.0
    %351 = vmatpush.xpose.msra.mxu0 %v308
    %352 = vmatpush.xpose.msra.mxu0 %v305
    %353 = vmatpush.xpose.msra.mxu0 %v302
    %354 = vmatmul.f32.gmra.mxu0 %v337
    %v355 = vpop.f32.mrf.mxu0
    %v356 = vadd.f32 0.0, %v355
    %357 = vdwg.mxu0
    %359 = vset.pattern.permute.xlu0 0
    %360 = vperm.xlu0 %359, %v328
    %v361 = vpop.permute.xlu0 %360
    %364 = vset.pattern.permute.xlu0 0
    %365 = vperm.xlu0 %364, %v331
    %v366 = vpop.permute.xlu0 %365
    %369 = vset.pattern.permute.xlu0 0
    %370 = vperm.xlu0 %369, %v334
    %v371 = vpop.permute.xlu0 %370
    %v373 = vperm.slane %v356, 0
    %v374 = vadd.f32 %v361, %v373
    %v375 = vadd.f32 %v366, %v373
    %v376 = vadd.f32 %v371, %v373
    %v377 = vmul.f32 %v374, 0.2
    %v378 = vmul.f32 %v375, 0.2
    %v379 = vmul.f32 %v376, 0.2
    %v380 = vmax.f32 %v374, %v377
    %v381 = vmax.f32 %v375, %v378
    %v382 = vmax.f32 %v376, %v379
    %v383 = vadd.f32 %v380, %v30
    %v384 = vadd.f32 %v381, %v31
    %v385 = vadd.f32 %v382, %v32
    %v386 = vsel %vm172, %v383, -inf
    %387 = vmax.xlane.f32.xlu0 %v386
    %v388 = vpop.xlane.xlu0 %387
    %v389 = vsel %vm172, %v384, -inf
    %390 = vmax.xlane.f32.xlu0 %v389
    %v391 = vpop.xlane.xlu0 %390
    %v392 = vsel %vm172, %v385, -inf
    %393 = vmax.xlane.f32.xlu0 %v392
    %v394 = vpop.xlane.xlu0 %393
    %v395 = vsub.f32 %v383, %v388
    %v396 = vsub.f32 %v384, %v391
    %v397 = vsub.f32 %v385, %v394
    %v398 = vmul.f32 %v395, 1.442695
    %v399 = vpow.pop %v398
    %v400 = vmul.f32 %v396, 1.442695
    %v401 = vpow.pop %v400
    %v402 = vmul.f32 %v397, 1.442695
    %v403 = vpow.pop %v402
    %v404 = vsel %vm172, %v399, 0.0
    %405 = vadd.xlane.f32.xlu0 %v404
    %v406 = vpop.xlane.xlu0 %405
    %v407 = vsel %vm172, %v401, 0.0
    %408 = vadd.xlane.f32.xlu0 %v407
    %v409 = vpop.xlane.xlu0 %408
    %v410 = vsel %vm172, %v403, 0.0
    %411 = vadd.xlane.f32.xlu0 %v410
    %v412 = vpop.xlane.xlu0 %411
    %v413 = vrcp.pop %v406
    %v414 = vrcp.pop %v409
    %v415 = vrcp.pop %v412
    %v416 = vmul.f32 %v399, %v413
    %v417 = vmul.f32 %v401, %v414
    %v418 = vmul.f32 %v403, %v415
    %s419 = scalar_lea.vmem %s5, 1
    %v420 = vld [vmem:[%s419] sm:$0x1]
    %v422 = vperm.slane %v420, 0
    %v425 = vsel %vm172, %v416, 0
    %v428 = vsel %vm172, %v417, 0
    %v431 = vsel %vm172, %v418, 0
    %433 = vmatpush.msra.mxu0 0.0
    %434 = vmatpush.msra.mxu0 0.0
    %435 = vmatpush.msra.mxu0 0.0
    %436 = vmatpush.msra.mxu0 0.0
    %437 = vmatpush.msra.mxu0 0.0
    %438 = vmatpush.msra.mxu0 0.0
    %439 = vmatpush.msra.mxu0 0.0
    %440 = vmatpush.msra.mxu0 0.0
    %441 = vmatpush.msra.mxu0 0.0
    %442 = vmatpush.msra.mxu0 0.0
    %443 = vmatpush.msra.mxu0 0.0
    %444 = vmatpush.msra.mxu0 0.0
    %445 = vmatpush.msra.mxu0 0.0
    %446 = vmatpush.msra.mxu0 %v308
    %447 = vmatpush.msra.mxu0 %v305
    %448 = vmatpush.msra.mxu0 %v302
    %449 = vmatmul.f32.gmra.mxu0 %v425
    %v450 = vpop.f32.mrf.mxu0
    %v451 = vadd.f32 %v422, %v450
    %452 = vmatmul.f32.gmra.mxu0 %v428
    %v453 = vpop.f32.mrf.mxu0
    %v454 = vadd.f32 %v422, %v453
    %455 = vmatmul.f32.gmra.mxu0 %v431
    %v456 = vpop.f32.mrf.mxu0
    %v457 = vadd.f32 %v422, %v456
    %458 = vdwg.mxu0
    %v459 = vmax.f32 %v451, 0.0
    %v460 = vmax.f32 %v454, 0.0
    %v461 = vmax.f32 %v457, 0.0
    %462 = vst [vmem:[#allocation2 + $0x10] sm:$0xff] %v459
    %463 = vst [vmem:[#allocation2 + $0x38] sm:$0xff] %v460
    %464 = vst [vmem:[#allocation2 + $0x60] sm:$0xff] %v461
    %s465 = scalar_lea.vmem %s3, 512
    %v466 = vld [vmem:[%s465] sm:$0xff]
    %v467 = vld [vmem:[%s465 + $0x8] sm:$0xff]
    %v468 = vld [vmem:[%s465 + $0x10] sm:$0xff]
    %v469 = vld [vmem:[%s465 + $0x18] sm:$0xff]
    %v470 = vld [vmem:[%s465 + $0x20] sm:$0xff]
    %v471 = vld [vmem:[%s465 + $0x28] sm:$0xff]
    %v472 = vld [vmem:[%s465 + $0x30] sm:$0xff]
    %v473 = vld [vmem:[%s465 + $0x38] sm:$0xff]
    %v474 = vld [vmem:[%s465 + $0x40] sm:$0xff]
    %v475 = vld [vmem:[%s465 + $0x48] sm:$0xff]
    %v476 = vld [vmem:[%s465 + $0x50] sm:$0xff]
    %v477 = vld [vmem:[%s465 + $0x58] sm:$0xff]
    %v478 = vld [vmem:[%s465 + $0x60] sm:$0xff]
    %v479 = vld [vmem:[%s465 + $0x68] sm:$0xff]
    %v480 = vld [vmem:[%s465 + $0x70] sm:$0xff]
    %v481 = vld [vmem:[%s465 + $0x78] sm:$0xff]
    %v482 = vld [vmem:[%s465 + $0x80] sm:$0xff]
    %v483 = vld [vmem:[%s465 + $0x88] sm:$0xff]
    %v484 = vld [vmem:[%s465 + $0x90] sm:$0xff]
    %v485 = vld [vmem:[%s465 + $0x98] sm:$0xff]
    %v486 = vld [vmem:[%s465 + $0xa0] sm:$0xff]
    %v487 = vld [vmem:[%s465 + $0xa8] sm:$0xff]
    %v488 = vld [vmem:[%s465 + $0xb0] sm:$0xff]
    %v489 = vld [vmem:[%s465 + $0xb8] sm:$0xff]
    %v490 = vld [vmem:[%s465 + $0xc0] sm:$0xff]
    %v491 = vld [vmem:[%s465 + $0xc8] sm:$0xff]
    %v492 = vld [vmem:[%s465 + $0xd0] sm:$0xff]
    %v493 = vld [vmem:[%s465 + $0xd8] sm:$0xff]
    %v494 = vld [vmem:[%s465 + $0xe0] sm:$0xff]
    %v495 = vld [vmem:[%s465 + $0xe8] sm:$0xff]
    %v496 = vld [vmem:[%s465 + $0xf0] sm:$0xff]
    %v497 = vld [vmem:[%s465 + $0xf8] sm:$0xff]
    %498 = vmatpush.msra.mxu0 %v496
    %499 = vmatpush.msra.mxu0 %v494
    %500 = vmatpush.msra.mxu0 %v492
    %501 = vmatpush.msra.mxu0 %v490
    %502 = vmatpush.msra.mxu0 %v488
    %503 = vmatpush.msra.mxu0 %v486
    %504 = vmatpush.msra.mxu0 %v484
    %505 = vmatpush.msra.mxu0 %v482
    %506 = vmatpush.msra.mxu0 %v480
    %507 = vmatpush.msra.mxu0 %v478
    %508 = vmatpush.msra.mxu0 %v476
    %509 = vmatpush.msra.mxu0 %v474
    %510 = vmatpush.msra.mxu0 %v472
    %511 = vmatpush.msra.mxu0 %v470
    %512 = vmatpush.msra.mxu0 %v468
    %513 = vmatpush.msra.mxu0 %v466
    %514 = vmatmul.f32.gmra.mxu0 %v459
    %v515 = vpop.f32.mrf.mxu0
    %v516 = vadd.f32 0.0, %v515
    %517 = vmatmul.f32.gmra.mxu0 %v460
    %v518 = vpop.f32.mrf.mxu0
    %v519 = vadd.f32 0.0, %v518
    %520 = vmatmul.f32.gmra.mxu0 %v461
    %v521 = vpop.f32.mrf.mxu0
    %v522 = vadd.f32 0.0, %v521
    %523 = vdwg.mxu0
    %524 = vmatpush.msra.mxu0 %v497
    %525 = vmatpush.msra.mxu0 %v495
    %526 = vmatpush.msra.mxu0 %v493
    %527 = vmatpush.msra.mxu0 %v491
    %528 = vmatpush.msra.mxu0 %v489
    %529 = vmatpush.msra.mxu0 %v487
    %530 = vmatpush.msra.mxu0 %v485
    %531 = vmatpush.msra.mxu0 %v483
    %532 = vmatpush.msra.mxu0 %v481
    %533 = vmatpush.msra.mxu0 %v479
    %534 = vmatpush.msra.mxu0 %v477
    %535 = vmatpush.msra.mxu0 %v475
    %536 = vmatpush.msra.mxu0 %v473
    %537 = vmatpush.msra.mxu0 %v471
    %538 = vmatpush.msra.mxu0 %v469
    %539 = vmatpush.msra.mxu0 %v467
    %540 = vmatmul.f32.gmra.mxu0 %v459
    %v541 = vpop.f32.mrf.mxu0
    %v542 = vadd.f32 0.0, %v541
    %543 = vmatmul.f32.gmra.mxu0 %v460
    %v544 = vpop.f32.mrf.mxu0
    %v545 = vadd.f32 0.0, %v544
    %546 = vmatmul.f32.gmra.mxu0 %v461
    %v547 = vpop.f32.mrf.mxu0
    %v548 = vadd.f32 0.0, %v547
    %549 = vdwg.mxu0
    %s550 = scalar_lea.vmem %s4, 2
    %v551 = vld [vmem:[%s550] sm:$0x1]
    %552 = vmatpush.xpose.msra.mxu0 0.0
    %553 = vmatpush.xpose.msra.mxu0 0.0
    %554 = vmatpush.xpose.msra.mxu0 0.0
    %555 = vmatpush.xpose.msra.mxu0 0.0
    %556 = vmatpush.xpose.msra.mxu0 0.0
    %557 = vmatpush.xpose.msra.mxu0 0.0
    %558 = vmatpush.xpose.msra.mxu0 0.0
    %559 = vmatpush.xpose.msra.mxu0 0.0
    %560 = vmatpush.xpose.msra.mxu0 0.0
    %561 = vmatpush.xpose.msra.mxu0 0.0
    %562 = vmatpush.xpose.msra.mxu0 0.0
    %563 = vmatpush.xpose.msra.mxu0 0.0
    %564 = vmatpush.xpose.msra.mxu0 0.0
    %565 = vmatpush.xpose.msra.mxu0 %v522
    %566 = vmatpush.xpose.msra.mxu0 %v519
    %567 = vmatpush.xpose.msra.mxu0 %v516
    %568 = vmatmul.f32.gmra.mxu0 %v551
    %v569 = vpop.f32.mrf.mxu0
    %v570 = vadd.f32 0.0, %v569
    %571 = vdwg.mxu0
    %573 = vset.pattern.permute.xlu0 0
    %574 = vperm.xlu0 %573, %v542
    %v575 = vpop.permute.xlu0 %574
    %578 = vset.pattern.permute.xlu0 0
    %579 = vperm.xlu0 %578, %v545
    %v580 = vpop.permute.xlu0 %579
    %583 = vset.pattern.permute.xlu0 0
    %584 = vperm.xlu0 %583, %v548
    %v585 = vpop.permute.xlu0 %584
    %v587 = vperm.slane %v570, 0
    %v588 = vadd.f32 %v575, %v587
    %v589 = vadd.f32 %v580, %v587
    %v590 = vadd.f32 %v585, %v587
    %v591 = vmul.f32 %v588, 0.2
    %v592 = vmul.f32 %v589, 0.2
    %v593 = vmul.f32 %v590, 0.2
    %v594 = vmax.f32 %v588, %v591
    %v595 = vmax.f32 %v589, %v592
    %v596 = vmax.f32 %v590, %v593
    %v597 = vadd.f32 %v594, %v30
    %v598 = vadd.f32 %v595, %v31
    %v599 = vadd.f32 %v596, %v32
    %v600 = vsel %vm172, %v597, -inf
    %601 = vmax.xlane.f32.xlu0 %v600
    %v602 = vpop.xlane.xlu0 %601
    %v603 = vsel %vm172, %v598, -inf
    %604 = vmax.xlane.f32.xlu0 %v603
    %v605 = vpop.xlane.xlu0 %604
    %v606 = vsel %vm172, %v599, -inf
    %607 = vmax.xlane.f32.xlu0 %v606
    %v608 = vpop.xlane.xlu0 %607
    %v609 = vsub.f32 %v597, %v602
    %v610 = vsub.f32 %v598, %v605
    %v611 = vsub.f32 %v599, %v608
    %v612 = vmul.f32 %v609, 1.442695
    %v613 = vpow.pop %v612
    %v614 = vmul.f32 %v610, 1.442695
    %v615 = vpow.pop %v614
    %v616 = vmul.f32 %v611, 1.442695
    %v617 = vpow.pop %v616
    %v618 = vsel %vm172, %v613, 0.0
    %619 = vadd.xlane.f32.xlu0 %v618
    %v620 = vpop.xlane.xlu0 %619
    %v621 = vsel %vm172, %v615, 0.0
    %622 = vadd.xlane.f32.xlu0 %v621
    %v623 = vpop.xlane.xlu0 %622
    %v624 = vsel %vm172, %v617, 0.0
    %625 = vadd.xlane.f32.xlu0 %v624
    %v626 = vpop.xlane.xlu0 %625
    %v627 = vrcp.pop %v620
    %v628 = vrcp.pop %v623
    %v629 = vrcp.pop %v626
    %v630 = vmul.f32 %v613, %v627
    %v631 = vmul.f32 %v615, %v628
    %v632 = vmul.f32 %v617, %v629
    %s633 = scalar_lea.vmem %s5, 2
    %v634 = vld [vmem:[%s633] sm:$0x1]
    %v636 = vperm.slane %v634, 0
    %v639 = vsel %vm172, %v630, 0
    %v642 = vsel %vm172, %v631, 0
    %v645 = vsel %vm172, %v632, 0
    %647 = vmatpush.msra.mxu0 0.0
    %648 = vmatpush.msra.mxu0 0.0
    %649 = vmatpush.msra.mxu0 0.0
    %650 = vmatpush.msra.mxu0 0.0
    %651 = vmatpush.msra.mxu0 0.0
    %652 = vmatpush.msra.mxu0 0.0
    %653 = vmatpush.msra.mxu0 0.0
    %654 = vmatpush.msra.mxu0 0.0
    %655 = vmatpush.msra.mxu0 0.0
    %656 = vmatpush.msra.mxu0 0.0
    %657 = vmatpush.msra.mxu0 0.0
    %658 = vmatpush.msra.mxu0 0.0
    %659 = vmatpush.msra.mxu0 0.0
    %660 = vmatpush.msra.mxu0 %v522
    %661 = vmatpush.msra.mxu0 %v519
    %662 = vmatpush.msra.mxu0 %v516
    %663 = vmatmul.f32.gmra.mxu0 %v639
    %v664 = vpop.f32.mrf.mxu0
    %v665 = vadd.f32 %v636, %v664
    %666 = vmatmul.f32.gmra.mxu0 %v642
    %v667 = vpop.f32.mrf.mxu0
    %v668 = vadd.f32 %v636, %v667
    %669 = vmatmul.f32.gmra.mxu0 %v645
    %v670 = vpop.f32.mrf.mxu0
    %v671 = vadd.f32 %v636, %v670
    %672 = vdwg.mxu0
    %v673 = vmax.f32 %v665, 0.0
    %v674 = vmax.f32 %v668, 0.0
    %v675 = vmax.f32 %v671, 0.0
    %676 = vst [vmem:[#allocation2 + $0x18] sm:$0xff] %v673
    %677 = vst [vmem:[#allocation2 + $0x40] sm:$0xff] %v674
    %678 = vst [vmem:[#allocation2 + $0x68] sm:$0xff] %v675
    %s679 = scalar_lea.vmem %s3, 768
    %v680 = vld [vmem:[%s679] sm:$0xff]
    %v681 = vld [vmem:[%s679 + $0x8] sm:$0xff]
    %v682 = vld [vmem:[%s679 + $0x10] sm:$0xff]
    %v683 = vld [vmem:[%s679 + $0x18] sm:$0xff]
    %v684 = vld [vmem:[%s679 + $0x20] sm:$0xff]
    %v685 = vld [vmem:[%s679 + $0x28] sm:$0xff]
    %v686 = vld [vmem:[%s679 + $0x30] sm:$0xff]
    %v687 = vld [vmem:[%s679 + $0x38] sm:$0xff]
    %v688 = vld [vmem:[%s679 + $0x40] sm:$0xff]
    %v689 = vld [vmem:[%s679 + $0x48] sm:$0xff]
    %v690 = vld [vmem:[%s679 + $0x50] sm:$0xff]
    %v691 = vld [vmem:[%s679 + $0x58] sm:$0xff]
    %v692 = vld [vmem:[%s679 + $0x60] sm:$0xff]
    %v693 = vld [vmem:[%s679 + $0x68] sm:$0xff]
    %v694 = vld [vmem:[%s679 + $0x70] sm:$0xff]
    %v695 = vld [vmem:[%s679 + $0x78] sm:$0xff]
    %v696 = vld [vmem:[%s679 + $0x80] sm:$0xff]
    %v697 = vld [vmem:[%s679 + $0x88] sm:$0xff]
    %v698 = vld [vmem:[%s679 + $0x90] sm:$0xff]
    %v699 = vld [vmem:[%s679 + $0x98] sm:$0xff]
    %v700 = vld [vmem:[%s679 + $0xa0] sm:$0xff]
    %v701 = vld [vmem:[%s679 + $0xa8] sm:$0xff]
    %v702 = vld [vmem:[%s679 + $0xb0] sm:$0xff]
    %v703 = vld [vmem:[%s679 + $0xb8] sm:$0xff]
    %v704 = vld [vmem:[%s679 + $0xc0] sm:$0xff]
    %v705 = vld [vmem:[%s679 + $0xc8] sm:$0xff]
    %v706 = vld [vmem:[%s679 + $0xd0] sm:$0xff]
    %v707 = vld [vmem:[%s679 + $0xd8] sm:$0xff]
    %v708 = vld [vmem:[%s679 + $0xe0] sm:$0xff]
    %v709 = vld [vmem:[%s679 + $0xe8] sm:$0xff]
    %v710 = vld [vmem:[%s679 + $0xf0] sm:$0xff]
    %v711 = vld [vmem:[%s679 + $0xf8] sm:$0xff]
    %712 = vmatpush.msra.mxu0 %v710
    %713 = vmatpush.msra.mxu0 %v708
    %714 = vmatpush.msra.mxu0 %v706
    %715 = vmatpush.msra.mxu0 %v704
    %716 = vmatpush.msra.mxu0 %v702
    %717 = vmatpush.msra.mxu0 %v700
    %718 = vmatpush.msra.mxu0 %v698
    %719 = vmatpush.msra.mxu0 %v696
    %720 = vmatpush.msra.mxu0 %v694
    %721 = vmatpush.msra.mxu0 %v692
    %722 = vmatpush.msra.mxu0 %v690
    %723 = vmatpush.msra.mxu0 %v688
    %724 = vmatpush.msra.mxu0 %v686
    %725 = vmatpush.msra.mxu0 %v684
    %726 = vmatpush.msra.mxu0 %v682
    %727 = vmatpush.msra.mxu0 %v680
    %728 = vmatmul.f32.gmra.mxu0 %v673
    %v729 = vpop.f32.mrf.mxu0
    %v730 = vadd.f32 0.0, %v729
    %731 = vmatmul.f32.gmra.mxu0 %v674
    %v732 = vpop.f32.mrf.mxu0
    %v733 = vadd.f32 0.0, %v732
    %734 = vmatmul.f32.gmra.mxu0 %v675
    %v735 = vpop.f32.mrf.mxu0
    %v736 = vadd.f32 0.0, %v735
    %737 = vdwg.mxu0
    %738 = vmatpush.msra.mxu0 %v711
    %739 = vmatpush.msra.mxu0 %v709
    %740 = vmatpush.msra.mxu0 %v707
    %741 = vmatpush.msra.mxu0 %v705
    %742 = vmatpush.msra.mxu0 %v703
    %743 = vmatpush.msra.mxu0 %v701
    %744 = vmatpush.msra.mxu0 %v699
    %745 = vmatpush.msra.mxu0 %v697
    %746 = vmatpush.msra.mxu0 %v695
    %747 = vmatpush.msra.mxu0 %v693
    %748 = vmatpush.msra.mxu0 %v691
    %749 = vmatpush.msra.mxu0 %v689
    %750 = vmatpush.msra.mxu0 %v687
    %751 = vmatpush.msra.mxu0 %v685
    %752 = vmatpush.msra.mxu0 %v683
    %753 = vmatpush.msra.mxu0 %v681
    %754 = vmatmul.f32.gmra.mxu0 %v673
    %v755 = vpop.f32.mrf.mxu0
    %v756 = vadd.f32 0.0, %v755
    %757 = vmatmul.f32.gmra.mxu0 %v674
    %v758 = vpop.f32.mrf.mxu0
    %v759 = vadd.f32 0.0, %v758
    %760 = vmatmul.f32.gmra.mxu0 %v675
    %v761 = vpop.f32.mrf.mxu0
    %v762 = vadd.f32 0.0, %v761
    %763 = vdwg.mxu0
    %s764 = scalar_lea.vmem %s4, 3
    %v765 = vld [vmem:[%s764] sm:$0x1]
    %766 = vmatpush.xpose.msra.mxu0 0.0
    %767 = vmatpush.xpose.msra.mxu0 0.0
    %768 = vmatpush.xpose.msra.mxu0 0.0
    %769 = vmatpush.xpose.msra.mxu0 0.0
    %770 = vmatpush.xpose.msra.mxu0 0.0
    %771 = vmatpush.xpose.msra.mxu0 0.0
    %772 = vmatpush.xpose.msra.mxu0 0.0
    %773 = vmatpush.xpose.msra.mxu0 0.0
    %774 = vmatpush.xpose.msra.mxu0 0.0
    %775 = vmatpush.xpose.msra.mxu0 0.0
    %776 = vmatpush.xpose.msra.mxu0 0.0
    %777 = vmatpush.xpose.msra.mxu0 0.0
    %778 = vmatpush.xpose.msra.mxu0 0.0
    %779 = vmatpush.xpose.msra.mxu0 %v736
    %780 = vmatpush.xpose.msra.mxu0 %v733
    %781 = vmatpush.xpose.msra.mxu0 %v730
    %782 = vmatmul.f32.gmra.mxu0 %v765
    %v783 = vpop.f32.mrf.mxu0
    %v784 = vadd.f32 0.0, %v783
    %785 = vdwg.mxu0
    %787 = vset.pattern.permute.xlu0 0
    %788 = vperm.xlu0 %787, %v756
    %v789 = vpop.permute.xlu0 %788
    %792 = vset.pattern.permute.xlu0 0
    %793 = vperm.xlu0 %792, %v759
    %v794 = vpop.permute.xlu0 %793
    %797 = vset.pattern.permute.xlu0 0
    %798 = vperm.xlu0 %797, %v762
    %v799 = vpop.permute.xlu0 %798
    %v801 = vperm.slane %v784, 0
    %v802 = vadd.f32 %v789, %v801
    %v803 = vadd.f32 %v794, %v801
    %v804 = vadd.f32 %v799, %v801
    %v805 = vmul.f32 %v802, 0.2
    %v806 = vmul.f32 %v803, 0.2
    %v807 = vmul.f32 %v804, 0.2
    %v808 = vmax.f32 %v802, %v805
    %v809 = vmax.f32 %v803, %v806
    %v810 = vmax.f32 %v804, %v807
    %v811 = vadd.f32 %v808, %v30
    %v812 = vadd.f32 %v809, %v31
    %v813 = vadd.f32 %v810, %v32
    %v814 = vsel %vm172, %v811, -inf
    %815 = vmax.xlane.f32.xlu0 %v814
    %v816 = vpop.xlane.xlu0 %815
    %v817 = vsel %vm172, %v812, -inf
    %818 = vmax.xlane.f32.xlu0 %v817
    %v819 = vpop.xlane.xlu0 %818
    %v820 = vsel %vm172, %v813, -inf
    %821 = vmax.xlane.f32.xlu0 %v820
    %v822 = vpop.xlane.xlu0 %821
    %v823 = vsub.f32 %v811, %v816
    %v824 = vsub.f32 %v812, %v819
    %v825 = vsub.f32 %v813, %v822
    %v826 = vmul.f32 %v823, 1.442695
    %v827 = vpow.pop %v826
    %v828 = vmul.f32 %v824, 1.442695
    %v829 = vpow.pop %v828
    %v830 = vmul.f32 %v825, 1.442695
    %v831 = vpow.pop %v830
    %v832 = vsel %vm172, %v827, 0.0
    %833 = vadd.xlane.f32.xlu0 %v832
    %v834 = vpop.xlane.xlu0 %833
    %v835 = vsel %vm172, %v829, 0.0
    %836 = vadd.xlane.f32.xlu0 %v835
    %v837 = vpop.xlane.xlu0 %836
    %v838 = vsel %vm172, %v831, 0.0
    %839 = vadd.xlane.f32.xlu0 %v838
    %v840 = vpop.xlane.xlu0 %839
    %v841 = vrcp.pop %v834
    %v842 = vrcp.pop %v837
    %v843 = vrcp.pop %v840
    %v844 = vmul.f32 %v827, %v841
    %v845 = vmul.f32 %v829, %v842
    %v846 = vmul.f32 %v831, %v843
    %s847 = scalar_lea.vmem %s5, 3
    %v848 = vld [vmem:[%s847] sm:$0x1]
    %v850 = vperm.slane %v848, 0
    %v853 = vsel %vm172, %v844, 0
    %v856 = vsel %vm172, %v845, 0
    %v859 = vsel %vm172, %v846, 0
    %861 = vmatpush.msra.mxu0 0.0
    %862 = vmatpush.msra.mxu0 0.0
    %863 = vmatpush.msra.mxu0 0.0
    %864 = vmatpush.msra.mxu0 0.0
    %865 = vmatpush.msra.mxu0 0.0
    %866 = vmatpush.msra.mxu0 0.0
    %867 = vmatpush.msra.mxu0 0.0
    %868 = vmatpush.msra.mxu0 0.0
    %869 = vmatpush.msra.mxu0 0.0
    %870 = vmatpush.msra.mxu0 0.0
    %871 = vmatpush.msra.mxu0 0.0
    %872 = vmatpush.msra.mxu0 0.0
    %873 = vmatpush.msra.mxu0 0.0
    %874 = vmatpush.msra.mxu0 %v736
    %875 = vmatpush.msra.mxu0 %v733
    %876 = vmatpush.msra.mxu0 %v730
    %877 = vmatmul.f32.gmra.mxu0 %v853
    %v878 = vpop.f32.mrf.mxu0
    %v879 = vadd.f32 %v850, %v878
    %880 = vmatmul.f32.gmra.mxu0 %v856
    %v881 = vpop.f32.mrf.mxu0
    %v882 = vadd.f32 %v850, %v881
    %883 = vmatmul.f32.gmra.mxu0 %v859
    %v884 = vpop.f32.mrf.mxu0
    %v885 = vadd.f32 %v850, %v884
    %886 = vdwg.mxu0
    %v887 = vmax.f32 %v879, 0.0
    %v888 = vmax.f32 %v882, 0.0
    %v889 = vmax.f32 %v885, 0.0
    %890 = vst [vmem:[#allocation2 + $0x20] sm:$0xff] %v887
    %891 = vst [vmem:[#allocation2 + $0x48] sm:$0xff] %v888
    %892 = vst [vmem:[#allocation2 + $0x70] sm:$0xff] %v889
    %v893 = vld [vmem:[%s2] sm:$0x3]
    %v894 = vld [vmem:[#allocation2] sm:$0xff]
    %v895 = vld [vmem:[#allocation2 + $0x8] sm:$0xff]
    %v896 = vld [vmem:[#allocation2 + $0x10] sm:$0xff]
    %v897 = vld [vmem:[#allocation2 + $0x18] sm:$0xff]
    %v898 = vld [vmem:[#allocation2 + $0x20] sm:$0xff]
    %v899 = vld [vmem:[#allocation2 + $0x28] sm:$0xff]
    %v900 = vld [vmem:[#allocation2 + $0x30] sm:$0xff]
    %v901 = vld [vmem:[#allocation2 + $0x38] sm:$0xff]
    %v902 = vld [vmem:[#allocation2 + $0x40] sm:$0xff]
    %v903 = vld [vmem:[#allocation2 + $0x48] sm:$0xff]
    %v904 = vld [vmem:[#allocation2 + $0x50] sm:$0xff]
    %v905 = vld [vmem:[#allocation2 + $0x58] sm:$0xff]
    %v906 = vld [vmem:[#allocation2 + $0x60] sm:$0xff]
    %v907 = vld [vmem:[#allocation2 + $0x68] sm:$0xff]
    %v908 = vld [vmem:[#allocation2 + $0x70] sm:$0xff]
    %v910 = vsel %vm172, %v893, 0
    %912 = vmatpush.msra.mxu0 0.0
    %913 = vmatpush.msra.mxu0 0.0
    %914 = vmatpush.msra.mxu0 0.0
    %915 = vmatpush.msra.mxu0 0.0
    %916 = vmatpush.msra.mxu0 0.0
    %917 = vmatpush.msra.mxu0 0.0
    %918 = vmatpush.msra.mxu0 0.0
    %919 = vmatpush.msra.mxu0 0.0
    %920 = vmatpush.msra.mxu0 0.0
    %921 = vmatpush.msra.mxu0 0.0
    %922 = vmatpush.msra.mxu0 0.0
    %923 = vmatpush.msra.mxu0 0.0
    %924 = vmatpush.msra.mxu0 0.0
    %925 = vmatpush.msra.mxu0 %v904
    %926 = vmatpush.msra.mxu0 %v899
    %927 = vmatpush.msra.mxu0 %v894
    %928 = vmatmul.f32.gmra.mxu0 %v910
    %v929 = vpop.f32.mrf.mxu0
    %v930 = vadd.f32 0.0, %v929
    %931 = vdwg.mxu0
    %932 = vmatpush.msra.mxu0 0.0
    %933 = vmatpush.msra.mxu0 0.0
    %934 = vmatpush.msra.mxu0 0.0
    %935 = vmatpush.msra.mxu0 0.0
    %936 = vmatpush.msra.mxu0 0.0
    %937 = vmatpush.msra.mxu0 0.0
    %938 = vmatpush.msra.mxu0 0.0
    %939 = vmatpush.msra.mxu0 0.0
    %940 = vmatpush.msra.mxu0 0.0
    %941 = vmatpush.msra.mxu0 0.0
    %942 = vmatpush.msra.mxu0 0.0
    %943 = vmatpush.msra.mxu0 0.0
    %944 = vmatpush.msra.mxu0 0.0
    %945 = vmatpush.msra.mxu0 %v905
    %946 = vmatpush.msra.mxu0 %v900
    %947 = vmatpush.msra.mxu0 %v895
    %948 = vmatmul.f32.gmra.mxu0 %v910
    %v949 = vpop.f32.mrf.mxu0
    %v950 = vadd.f32 0.0, %v949
    %951 = vdwg.mxu0
    %952 = vmatpush.msra.mxu0 0.0
    %953 = vmatpush.msra.mxu0 0.0
    %954 = vmatpush.msra.mxu0 0.0
    %955 = vmatpush.msra.mxu0 0.0
    %956 = vmatpush.msra.mxu0 0.0
    %957 = vmatpush.msra.mxu0 0.0
    %958 = vmatpush.msra.mxu0 0.0
    %959 = vmatpush.msra.mxu0 0.0
    %960 = vmatpush.msra.mxu0 0.0
    %961 = vmatpush.msra.mxu0 0.0
    %962 = vmatpush.msra.mxu0 0.0
    %963 = vmatpush.msra.mxu0 0.0
    %964 = vmatpush.msra.mxu0 0.0
    %965 = vmatpush.msra.mxu0 %v906
    %966 = vmatpush.msra.mxu0 %v901
    %967 = vmatpush.msra.mxu0 %v896
    %968 = vmatmul.f32.gmra.mxu0 %v910
    %v969 = vpop.f32.mrf.mxu0
    %v970 = vadd.f32 0.0, %v969
    %971 = vdwg.mxu0
    %972 = vmatpush.msra.mxu0 0.0
    %973 = vmatpush.msra.mxu0 0.0
    %974 = vmatpush.msra.mxu0 0.0
    %975 = vmatpush.msra.mxu0 0.0
    %976 = vmatpush.msra.mxu0 0.0
    %977 = vmatpush.msra.mxu0 0.0
    %978 = vmatpush.msra.mxu0 0.0
    %979 = vmatpush.msra.mxu0 0.0
    %980 = vmatpush.msra.mxu0 0.0
    %981 = vmatpush.msra.mxu0 0.0
    %982 = vmatpush.msra.mxu0 0.0
    %983 = vmatpush.msra.mxu0 0.0
    %984 = vmatpush.msra.mxu0 0.0
    %985 = vmatpush.msra.mxu0 %v907
    %986 = vmatpush.msra.mxu0 %v902
    %987 = vmatpush.msra.mxu0 %v897
    %988 = vmatmul.f32.gmra.mxu0 %v910
    %v989 = vpop.f32.mrf.mxu0
    %v990 = vadd.f32 0.0, %v989
    %991 = vdwg.mxu0
    %992 = vmatpush.msra.mxu0 0.0
    %993 = vmatpush.msra.mxu0 0.0
    %994 = vmatpush.msra.mxu0 0.0
    %995 = vmatpush.msra.mxu0 0.0
    %996 = vmatpush.msra.mxu0 0.0
    %997 = vmatpush.msra.mxu0 0.0
    %998 = vmatpush.msra.mxu0 0.0
    %999 = vmatpush.msra.mxu0 0.0
    %1000 = vmatpush.msra.mxu0 0.0
    %1001 = vmatpush.msra.mxu0 0.0
    %1002 = vmatpush.msra.mxu0 0.0
    %1003 = vmatpush.msra.mxu0 0.0
    %1004 = vmatpush.msra.mxu0 0.0
    %1005 = vmatpush.msra.mxu0 %v908
    %1006 = vmatpush.msra.mxu0 %v903
    %1007 = vmatpush.msra.mxu0 %v898
    %1008 = vmatmul.f32.gmra.mxu0 %v910
    %v1009 = vpop.f32.mrf.mxu0
    %v1010 = vadd.f32 0.0, %v1009
    %1011 = vdwg.mxu0
    %v1012 = vld [vmem:[%s6] sm:$0xff]
    %v1013 = vld [vmem:[%s6 + $0x8] sm:$0xff]
    %v1014 = vld [vmem:[%s6 + $0x10] sm:$0xff]
    %v1015 = vld [vmem:[%s6 + $0x18] sm:$0xff]
    %v1016 = vld [vmem:[%s6 + $0x20] sm:$0xff]
    %v1017 = vld [vmem:[%s6 + $0x28] sm:$0xff]
    %v1018 = vld [vmem:[%s6 + $0x30] sm:$0xff]
    %v1019 = vld [vmem:[%s6 + $0x38] sm:$0xff]
    %v1020 = vld [vmem:[%s6 + $0x40] sm:$0xff]
    %v1021 = vld [vmem:[%s6 + $0x48] sm:$0xff]
    %v1022 = vld [vmem:[%s6 + $0x50] sm:$0xff]
    %v1023 = vld [vmem:[%s6 + $0x58] sm:$0xff]
    %v1024 = vld [vmem:[%s6 + $0x60] sm:$0xff]
    %v1025 = vld [vmem:[%s6 + $0x68] sm:$0xff]
    %v1026 = vld [vmem:[%s6 + $0x70] sm:$0xff]
    %v1027 = vld [vmem:[%s6 + $0x78] sm:$0xff]
    %v1028 = vld [vmem:[%s6 + $0x80] sm:$0xff]
    %v1029 = vld [vmem:[%s6 + $0x88] sm:$0xff]
    %v1030 = vld [vmem:[%s6 + $0x90] sm:$0xff]
    %v1031 = vld [vmem:[%s6 + $0x98] sm:$0xff]
    %v1032 = vld [vmem:[%s6 + $0xa0] sm:$0xff]
    %v1033 = vld [vmem:[%s6 + $0xa8] sm:$0xff]
    %v1034 = vld [vmem:[%s6 + $0xb0] sm:$0xff]
    %v1035 = vld [vmem:[%s6 + $0xb8] sm:$0xff]
    %v1036 = vld [vmem:[%s6 + $0xc0] sm:$0xff]
    %v1037 = vld [vmem:[%s6 + $0xc8] sm:$0xff]
    %v1038 = vld [vmem:[%s6 + $0xd0] sm:$0xff]
    %v1039 = vld [vmem:[%s6 + $0xd8] sm:$0xff]
    %v1040 = vld [vmem:[%s6 + $0xe0] sm:$0xff]
    %v1041 = vld [vmem:[%s6 + $0xe8] sm:$0xff]
    %v1042 = vld [vmem:[%s6 + $0xf0] sm:$0xff]
    %v1043 = vld [vmem:[%s6 + $0xf8] sm:$0xff]
    %v1044 = vld [vmem:[%s6 + $0x100] sm:$0xff]
    %v1045 = vld [vmem:[%s6 + $0x108] sm:$0xff]
    %v1046 = vld [vmem:[%s6 + $0x110] sm:$0xff]
    %v1047 = vld [vmem:[%s6 + $0x118] sm:$0xff]
    %v1048 = vld [vmem:[%s6 + $0x120] sm:$0xff]
    %v1049 = vld [vmem:[%s6 + $0x128] sm:$0xff]
    %v1050 = vld [vmem:[%s6 + $0x130] sm:$0xff]
    %v1051 = vld [vmem:[%s6 + $0x138] sm:$0xff]
    %v1052 = vld [vmem:[%s6 + $0x140] sm:$0xff]
    %v1053 = vld [vmem:[%s6 + $0x148] sm:$0xff]
    %v1054 = vld [vmem:[%s6 + $0x150] sm:$0xff]
    %v1055 = vld [vmem:[%s6 + $0x158] sm:$0xff]
    %v1056 = vld [vmem:[%s6 + $0x160] sm:$0xff]
    %v1057 = vld [vmem:[%s6 + $0x168] sm:$0xff]
    %v1058 = vld [vmem:[%s6 + $0x170] sm:$0xff]
    %v1059 = vld [vmem:[%s6 + $0x178] sm:$0xff]
    %v1060 = vld [vmem:[%s6 + $0x180] sm:$0xff]
    %v1061 = vld [vmem:[%s6 + $0x188] sm:$0xff]
    %v1062 = vld [vmem:[%s6 + $0x190] sm:$0xff]
    %v1063 = vld [vmem:[%s6 + $0x198] sm:$0xff]
    %v1064 = vld [vmem:[%s6 + $0x1a0] sm:$0xff]
    %v1065 = vld [vmem:[%s6 + $0x1a8] sm:$0xff]
    %v1066 = vld [vmem:[%s6 + $0x1b0] sm:$0xff]
    %v1067 = vld [vmem:[%s6 + $0x1b8] sm:$0xff]
    %v1068 = vld [vmem:[%s6 + $0x1c0] sm:$0xff]
    %v1069 = vld [vmem:[%s6 + $0x1c8] sm:$0xff]
    %v1070 = vld [vmem:[%s6 + $0x1d0] sm:$0xff]
    %v1071 = vld [vmem:[%s6 + $0x1d8] sm:$0xff]
    %v1072 = vld [vmem:[%s6 + $0x1e0] sm:$0xff]
    %v1073 = vld [vmem:[%s6 + $0x1e8] sm:$0xff]
    %v1074 = vld [vmem:[%s6 + $0x1f0] sm:$0xff]
    %v1075 = vld [vmem:[%s6 + $0x1f8] sm:$0xff]
    %v1076 = vld [vmem:[%s6 + $0x200] sm:$0xff]
    %v1077 = vld [vmem:[%s6 + $0x208] sm:$0xff]
    %v1078 = vld [vmem:[%s6 + $0x210] sm:$0xff]
    %v1079 = vld [vmem:[%s6 + $0x218] sm:$0xff]
    %v1080 = vld [vmem:[%s6 + $0x220] sm:$0xff]
    %v1081 = vld [vmem:[%s6 + $0x228] sm:$0xff]
    %v1082 = vld [vmem:[%s6 + $0x230] sm:$0xff]
    %v1083 = vld [vmem:[%s6 + $0x238] sm:$0xff]
    %v1084 = vld [vmem:[%s6 + $0x240] sm:$0xff]
    %v1085 = vld [vmem:[%s6 + $0x248] sm:$0xff]
    %v1086 = vld [vmem:[%s6 + $0x250] sm:$0xff]
    %v1087 = vld [vmem:[%s6 + $0x258] sm:$0xff]
    %v1088 = vld [vmem:[%s6 + $0x260] sm:$0xff]
    %v1089 = vld [vmem:[%s6 + $0x268] sm:$0xff]
    %v1090 = vld [vmem:[%s6 + $0x270] sm:$0xff]
    %v1091 = vld [vmem:[%s6 + $0x278] sm:$0xff]
    %v1092 = vld [vmem:[%s7] sm:$0x1]
    %v1094 = vperm.slane %v1092, 0
    %1096 = vmatpush.msra.mxu0 %v1027
    %1097 = vmatpush.msra.mxu0 %v1026
    %1098 = vmatpush.msra.mxu0 %v1025
    %1099 = vmatpush.msra.mxu0 %v1024
    %1100 = vmatpush.msra.mxu0 %v1023
    %1101 = vmatpush.msra.mxu0 %v1022
    %1102 = vmatpush.msra.mxu0 %v1021
    %1103 = vmatpush.msra.mxu0 %v1020
    %1104 = vmatpush.msra.mxu0 %v1019
    %1105 = vmatpush.msra.mxu0 %v1018
    %1106 = vmatpush.msra.mxu0 %v1017
    %1107 = vmatpush.msra.mxu0 %v1016
    %1108 = vmatpush.msra.mxu0 %v1015
    %1109 = vmatpush.msra.mxu0 %v1014
    %1110 = vmatpush.msra.mxu0 %v1013
    %1111 = vmatpush.msra.mxu0 %v1012
    %1112 = vmatmul.f32.gmra.mxu0 %v930
    %v1113 = vpop.f32.mrf.mxu0
    %v1114 = vadd.f32 %v1094, %v1113
    %1115 = vdwg.mxu0
    %1116 = vmatpush.msra.mxu0 %v1043
    %1117 = vmatpush.msra.mxu0 %v1042
    %1118 = vmatpush.msra.mxu0 %v1041
    %1119 = vmatpush.msra.mxu0 %v1040
    %1120 = vmatpush.msra.mxu0 %v1039
    %1121 = vmatpush.msra.mxu0 %v1038
    %1122 = vmatpush.msra.mxu0 %v1037
    %1123 = vmatpush.msra.mxu0 %v1036
    %1124 = vmatpush.msra.mxu0 %v1035
    %1125 = vmatpush.msra.mxu0 %v1034
    %1126 = vmatpush.msra.mxu0 %v1033
    %1127 = vmatpush.msra.mxu0 %v1032
    %1128 = vmatpush.msra.mxu0 %v1031
    %1129 = vmatpush.msra.mxu0 %v1030
    %1130 = vmatpush.msra.mxu0 %v1029
    %1131 = vmatpush.msra.mxu0 %v1028
    %1132 = vmatmul.f32.gmra.mxu0 %v950
    %v1133 = vpop.f32.mrf.mxu0
    %v1134 = vadd.f32 %v1114, %v1133
    %1135 = vdwg.mxu0
    %1136 = vmatpush.msra.mxu0 %v1059
    %1137 = vmatpush.msra.mxu0 %v1058
    %1138 = vmatpush.msra.mxu0 %v1057
    %1139 = vmatpush.msra.mxu0 %v1056
    %1140 = vmatpush.msra.mxu0 %v1055
    %1141 = vmatpush.msra.mxu0 %v1054
    %1142 = vmatpush.msra.mxu0 %v1053
    %1143 = vmatpush.msra.mxu0 %v1052
    %1144 = vmatpush.msra.mxu0 %v1051
    %1145 = vmatpush.msra.mxu0 %v1050
    %1146 = vmatpush.msra.mxu0 %v1049
    %1147 = vmatpush.msra.mxu0 %v1048
    %1148 = vmatpush.msra.mxu0 %v1047
    %1149 = vmatpush.msra.mxu0 %v1046
    %1150 = vmatpush.msra.mxu0 %v1045
    %1151 = vmatpush.msra.mxu0 %v1044
    %1152 = vmatmul.f32.gmra.mxu0 %v970
    %v1153 = vpop.f32.mrf.mxu0
    %v1154 = vadd.f32 %v1134, %v1153
    %1155 = vdwg.mxu0
    %1156 = vmatpush.msra.mxu0 %v1075
    %1157 = vmatpush.msra.mxu0 %v1074
    %1158 = vmatpush.msra.mxu0 %v1073
    %1159 = vmatpush.msra.mxu0 %v1072
    %1160 = vmatpush.msra.mxu0 %v1071
    %1161 = vmatpush.msra.mxu0 %v1070
    %1162 = vmatpush.msra.mxu0 %v1069
    %1163 = vmatpush.msra.mxu0 %v1068
    %1164 = vmatpush.msra.mxu0 %v1067
    %1165 = vmatpush.msra.mxu0 %v1066
    %1166 = vmatpush.msra.mxu0 %v1065
    %1167 = vmatpush.msra.mxu0 %v1064
    %1168 = vmatpush.msra.mxu0 %v1063
    %1169 = vmatpush.msra.mxu0 %v1062
    %1170 = vmatpush.msra.mxu0 %v1061
    %1171 = vmatpush.msra.mxu0 %v1060
    %1172 = vmatmul.f32.gmra.mxu0 %v990
    %v1173 = vpop.f32.mrf.mxu0
    %v1174 = vadd.f32 %v1154, %v1173
    %1175 = vdwg.mxu0
    %1176 = vmatpush.msra.mxu0 %v1091
    %1177 = vmatpush.msra.mxu0 %v1090
    %1178 = vmatpush.msra.mxu0 %v1089
    %1179 = vmatpush.msra.mxu0 %v1088
    %1180 = vmatpush.msra.mxu0 %v1087
    %1181 = vmatpush.msra.mxu0 %v1086
    %1182 = vmatpush.msra.mxu0 %v1085
    %1183 = vmatpush.msra.mxu0 %v1084
    %1184 = vmatpush.msra.mxu0 %v1083
    %1185 = vmatpush.msra.mxu0 %v1082
    %1186 = vmatpush.msra.mxu0 %v1081
    %1187 = vmatpush.msra.mxu0 %v1080
    %1188 = vmatpush.msra.mxu0 %v1079
    %1189 = vmatpush.msra.mxu0 %v1078
    %1190 = vmatpush.msra.mxu0 %v1077
    %1191 = vmatpush.msra.mxu0 %v1076
    %1192 = vmatmul.f32.gmra.mxu0 %v1010
    %v1193 = vpop.f32.mrf.mxu0
    %v1194 = vadd.f32 %v1174, %v1193
    %1195 = vdwg.mxu0
    %vm1196 = vcmask 58368
    %v1197 = vsel %vm1196, %v1194, -inf
    %1198 = vmax.xlane.f32.xlu0 %v1197
    %v1199 = vpop.xlane.xlu0 %1198
    %v1200 = vsub.f32 %v1194, %v1199
    %v1201 = vmul.f32 %v1200, 1.442695
    %v1202 = vpow.pop %v1201
    %v1203 = vsel %vm1196, %v1202, 0.0
    %1204 = vadd.xlane.f32.xlu0 %v1203
    %v1205 = vpop.xlane.xlu0 %1204
    %v1206 = vlog2.pop %v1205
    %v1207 = vmul.f32 %v1206, 0.6931472
    %v1208 = vsub.f32 %v1200, %v1207
    %1209 = vst.msk [vmem:[#allocation3] sm:$0x3] %vm1196, %v1208
    // Predicated region
    $region34: #{gat_forward.1} parent=1 // pred_check
      _
    $region35: #{gat_forward.1} parent=1 // pred_check_branch
      %1211 = sbr.rel (0) target = $region37
    $region36: #{gat_forward.1} parent=1 // pred_region
      %1213 = vsyncadd [#allocation4], 0
      %s1215 = sshll.u32 [#allocation3], 4
      %s1216 = int_to_ptr.vmem [resolvable:$true] %s1215
      %s1217 = sshll.u32 %s8, 4
      %s1218 = int_to_ptr.hbm [resolvable:$true] %s1217
      %1220 = dma.vmem_to_hbm [thread:$0]  %s1216, 32, %s1218, [#allocation4]
    $region37: #{gat_forward.1} parent=1 // pred_fallthru
      _
    // Predicated region
    $region38: #{gat_forward.1} parent=1 // pred_check
      _
    $region39: #{gat_forward.1} parent=1 // pred_check_branch
      %1222 = sbr.rel (0) target = $region41
    $region40: #{gat_forward.1} parent=1 // pred_region
      %1224 = dma.done [#allocation4], 32
    $region41: #{gat_forward.1} parent=1 // pred_fallthru
      _
    %1225 = vsyncpa [#allocation4], 1

</llo_original>
